<compile_context>
chip_gen: v7x
topology: tpu7x:2x2x1
jax: 0.10.0
libtpu: 0.0.40
codegen_flags: <defaults>
</compile_context>

<pallas_src>
import functools
import itertools

import jax
import jax.numpy as jnp
from jax.experimental import pallas as pl
from jax.experimental.pallas import tpu as pltpu


def _round_up(v, m):
    return (v + m - 1) // m * m


@functools.lru_cache(maxsize=1)
def _vmem_limit_bytes():
    """~3/4 of per-core VMEM when discoverable (96 MiB v5e/v6e, 48 MiB v7x)."""
    get_info = getattr(pltpu, "get_tpu_info", None)
    if get_info is not None:
        try:
            cap = int(getattr(get_info(), "vmem_capacity_bytes", 0) or 0)
            if cap > 0:
                return int(min(max(cap * 3 // 4, 32 * 1024 * 1024),
                               100 * 1024 * 1024))
        except Exception:
            pass
    return 48 * 1024 * 1024


# ----------------------------------------------------------------------------
# Pallas kernel: tiled matmul with fused activations and fused BN statistics
# ----------------------------------------------------------------------------
def _conv_mm_kernel(a_ref, b_ref, bias_ref, o_ref, *rest,
                    in_act, out_act, compute_stats, m_valid):
    """One (M-tile, N-tile, parity) block of  out_act(in_act(A) @ B + bias).

    Grid = (MT, NT, P, KT); K innermost ("arbitrary") with an f32 VMEM
    accumulator.  If compute_stats, also emits per-column sum and sum-of-squares
    over the valid rows of this tile (fused BatchNorm statistics).
    """
    if compute_stats:
        sum_ref, sq_ref, acc_ref = rest
    else:
        (acc_ref,) = rest

    # NOTE: program_id/num_programs are evaluated at the top level of the
    # kernel (never inside a pl.when body) for interpret-mode compatibility.
    k = pl.program_id(3)
    nk = pl.num_programs(3)
    if compute_stats:
        m_idx = pl.program_id(0)

    @pl.when(k == 0)
    def _():
        acc_ref[...] = jnp.zeros_like(acc_ref)

    a = a_ref[...]                                      # (tile_m, tile_k), native dtype
    if in_act == "leaky_relu":
        a = jnp.where(a >= 0, a, a * jnp.array(0.2, dtype=a.dtype))
    elif in_act == "relu":
        a = jnp.maximum(a, jnp.array(0, dtype=a.dtype))
    acc_ref[...] += jnp.dot(a, b_ref[...], preferred_element_type=jnp.float32)

    @pl.when(k == nk - 1)
    def _():
        y = acc_ref[...] + bias_ref[...]                # (tile_m, tile_n) f32
        if out_act == "relu":
            y = jnp.maximum(y, 0.0)
        o_ref[...] = y.astype(o_ref.dtype)
        if compute_stats:
            tile_m = acc_ref.shape[0]
            row = jax.lax.broadcasted_iota(jnp.int32, (tile_m, 1), 0)
            valid = (row + m_idx * tile_m) < m_valid    # mask padded M rows
            yv = jnp.where(valid, y, 0.0)
            sum_ref[...] = jnp.sum(yv, axis=0, keepdims=True)       # (1, tile_n)
            sq_ref[...] = jnp.sum(yv * yv, axis=0, keepdims=True)   # (1, tile_n)


# ----------------------------------------------------------------------------
# Tiling helpers / Pallas wrapper
# ----------------------------------------------------------------------------
def _matmul_tiles(M, K, Nc, *, tile_m_max=1024, tile_k_max=1024, tile_n_max=1024):
    """(8,128)-friendly, lane-dense tiles; balanced so padding stays small."""
    n_m = pl.cdiv(M, tile_m_max)
    tile_m = _round_up(pl.cdiv(M, n_m), 16)             # bf16 sublane pack
    Mpad = _round_up(M, tile_m)

    Kp = _round_up(K, 128)                              # lane-dense A loads
    n_k = pl.cdiv(Kp, tile_k_max)
    tile_k = _round_up(pl.cdiv(Kp, n_k), 128)
    Kpad = _round_up(Kp, tile_k)

    Np = _round_up(Nc, 128)                             # lane-dense stores
    n_n = pl.cdiv(Np, tile_n_max)
    tile_n = _round_up(pl.cdiv(Np, n_n), 128)
    Npad = _round_up(Np, tile_n)
    return tile_m, Mpad, tile_k, Kpad, tile_n, Npad


def conv_matmul(patches, weights, bias, *, tile_m, tile_k, tile_n,
                in_act=None, out_act=None, out_dtype=jnp.float32,
                compute_stats=False, m_valid=None):
    """out[p] = out_act(in_act(patches[p]) @ weights[p] + bias)  (per parity p).

    patches: (P, Mpad, Kpad); weights: (P, Kpad, Npad); bias: (1, Npad) f32.
    Returns (P, Mpad, Npad)[, per-column sum (Npad,), sum_sq (Npad,)].
    """
    P, Mpad, Kpad = patches.shape
    _, _, Npad = weights.shape
    mt, nt, kt = Mpad // tile_m, Npad // tile_n, Kpad // tile_k
    grid = (mt, nt, P, kt)       # leading axis is a real parallel dim (megacore)

    kernel = functools.partial(
        _conv_mm_kernel, in_act=in_act, out_act=out_act,
        compute_stats=compute_stats,
        m_valid=m_valid if m_valid is not None else Mpad)

    in_specs = [
        pl.BlockSpec((None, tile_m, tile_k), lambda m, n, p, k: (p, m, k)),
        pl.BlockSpec((None, tile_k, tile_n), lambda m, n, p, k: (p, k, n)),
        pl.BlockSpec((1, tile_n), lambda m, n, p, k: (0, n)),
    ]
    out_spec = pl.BlockSpec((None, tile_m, tile_n), lambda m, n, p, k: (p, m, n))
    out_shape = jax.ShapeDtypeStruct((P, Mpad, Npad), out_dtype)
    if compute_stats:
        stat_spec = pl.BlockSpec((None, None, 1, tile_n),
                                 lambda m, n, p, k: (p, m, 0, n))
        stat_shape = jax.ShapeDtypeStruct((P, mt, 1, Npad), jnp.float32)
        out_specs = (out_spec, stat_spec, stat_spec)
        out_shapes = (out_shape, stat_shape, stat_shape)
    else:
        out_specs = out_spec
        out_shapes = out_shape

    res = pl.pallas_call(
        kernel,
        grid=grid,
        in_specs=in_specs,
        out_specs=out_specs,
        out_shape=out_shapes,
        scratch_shapes=[pltpu.VMEM((tile_m, tile_n), jnp.float32)],
        compiler_params=pltpu.CompilerParams(
            dimension_semantics=("parallel", "parallel", "parallel", "arbitrary"),
            vmem_limit_bytes=_vmem_limit_bytes()),
    )(patches, weights, bias)

    if compute_stats:
        out, s1, s2 = res
        return out, s1.sum(axis=(0, 1, 2)), s2.sum(axis=(0, 1, 2))
    return res


# ----------------------------------------------------------------------------
# XLA glue: patch gathers & weight repacking (pure gathers / reshapes)
# ----------------------------------------------------------------------------
def _im2col_down(x):
    """x: (N, Cin, D, H, W) -> (N*Dd*Hd*Wd, 64*Cin), feature order (kd,kh,kw,c)."""
    N, C, D, H, W = x.shape
    Dd, Hd, Wd = D // 2, H // 2, W // 2
    xp = jnp.pad(x, ((0, 0), (0, 0), (1, 1), (1, 1), (1, 1)))
    taps = []
    for kd in range(4):
        for kh in range(4):
            for kw in range(4):
                taps.append(xp[:, :, kd:kd + 2 * Dd:2, kh:kh + 2 * Hd:2, kw:kw + 2 * Wd:2])
    p = jnp.stack(taps, axis=0)                      # (64, N, C, Dd, Hd, Wd)
    p = p.transpose(1, 3, 4, 5, 0, 2)                # (N, Dd, Hd, Wd, 64, C)
    return p.reshape(N * Dd * Hd * Wd, 64 * C)


def _down_weight_mat(W_down):
    """Conv3d weight (inner, Cin, 4,4,4) -> (64*Cin, inner) matching _im2col_down."""
    inner, Cin = W_down.shape[:2]
    return W_down.transpose(2, 3, 4, 1, 0).reshape(64 * Cin, inner)


def _im2col_up(h):
    """h: (N, Dd, Hd, Wd, C) channels-last -> (8, N*Dd*Hd*Wd, 8*C) parity patches."""
    N, Dd, Hd, Wd, C = h.shape
    hp = jnp.pad(h, ((0, 0), (1, 1), (1, 1), (1, 1), (0, 0)))
    parities = []
    for pd, ph, pw in itertools.product((0, 1), repeat=3):
        taps = []
        for dt, ht, wt in itertools.product((0, 1), repeat=3):
            taps.append(hp[:, pd + dt:pd + dt + Dd,
                           ph + ht:ph + ht + Hd,
                           pw + wt:pw + wt + Wd, :])
        t = jnp.stack(taps, axis=4)                  # (N, Dd, Hd, Wd, 8, C)
        parities.append(t.reshape(N * Dd * Hd * Wd, 8 * C))
    return jnp.stack(parities, axis=0)               # (8, M, 8*C)


def _up_weight_mats(W_up):
    """ConvTranspose3d weight (inner, outer, 4,4,4) -> (8, 8*inner, outer).

    For parity (pd,ph,pw) and 2x2x2 tap (dt,ht,wt), the contributing kernel
    element is (3-pd-2dt, 3-ph-2ht, 3-pw-2wt)  [out = 2*i + k - 1].
    """
    inner, outer = W_up.shape[:2]
    mats = []
    for pd, ph, pw in itertools.product((0, 1), repeat=3):
        taps = []
        for dt, ht, wt in itertools.product((0, 1), repeat=3):
            taps.append(W_up[:, :, 3 - pd - 2 * dt, 3 - ph - 2 * ht, 3 - pw - 2 * wt])
        mats.append(jnp.stack(taps, axis=0).reshape(8 * inner, outer))
    return jnp.stack(mats, axis=0)                   # (8, 8*inner, outer)


# ----------------------------------------------------------------------------
# UnetSkipConnectionBlock (innermost) forward
# ----------------------------------------------------------------------------
def unet_innermost_forward(x, W_down, b_down, W_up, b_up, gamma, beta,
                           *, operand_dtype=jnp.bfloat16):
    """x: (N, input_nc, D, H, W) f32 -> (N, outer_nc + input_nc, D, H, W) f32."""
    N, Cin, D, H, W = x.shape
    assert D % 2 == 0 and H % 2 == 0 and W % 2 == 0
    inner_nc = W_down.shape[0]
    outer_nc = W_up.shape[1]
    Dd, Hd, Wd = D // 2, H // 2, W // 2

    # ------------- down: LeakyReLU(0.2) + Conv3d(k=4, s=2, p=1) --------------
    M1, K1 = N * Dd * Hd * Wd, 64 * Cin
    tm1, M1p, tk1, K1p, tn1, N1p = _matmul_tiles(M1, K1, inner_nc)

    # Cast to the MXU operand dtype BEFORE im2col (halves patch HBM bytes).
    p1 = _im2col_down(x.astype(operand_dtype))
    p1 = jnp.pad(p1, ((0, M1p - M1), (0, K1p - K1)))[None]
    w1 = _down_weight_mat(W_down)
    # Invariant: padded weight columns AND padded bias lanes are exact zeros so
    # padded output channels are exact zeros after ReLU (safe to feed onward).
    w1 = jnp.pad(w1, ((0, K1p - K1), (0, N1p - inner_nc))).astype(operand_dtype)[None]
    bias1 = jnp.pad(b_down.astype(jnp.float32), (0, N1p - inner_nc))[None]

    # LeakyReLU fused onto the patch tile; the up path's ReLU fused onto the
    # f32 accumulator before the store (zero padding is a fixed point of both).
    h1 = conv_matmul(p1, w1, bias1, tile_m=tm1, tile_k=tk1, tile_n=tn1,
                     in_act="leaky_relu", out_act="relu",
                     out_dtype=operand_dtype)                    # (1, M1p, N1p)

    # Keep the zero-padded channels (lane-dense up-conv K); only drop padded rows.
    h1 = h1[0, :M1, :].reshape(N, Dd, Hd, Wd, N1p)               # channels-last

    # ---- up: ConvTranspose3d(k=4, s=2, p=1) as 8 parity sub-convolutions ----
    C1 = N1p
    M2, K2 = M1, 8 * C1
    tm2, M2p, tk2, K2p, tn2, N2p = _matmul_tiles(M2, K2, outer_nc)

    p2 = _im2col_up(h1)                                          # (8, M2, K2)
    p2 = jnp.pad(p2, ((0, 0), (0, M2p - M2), (0, K2p - K2)))
    W_up_p = jnp.pad(W_up, ((0, C1 - inner_nc), (0, 0), (0, 0), (0, 0), (0, 0)))
    w2 = _up_weight_mats(W_up_p)                                 # (8, 8*C1, outer)
    w2 = jnp.pad(w2, ((0, 0), (0, K2p - K2), (0, N2p - outer_nc))).astype(operand_dtype)
    bias2 = jnp.pad(b_up.astype(jnp.float32), (0, N2p - outer_nc))[None]

    # Output in operand dtype; BN statistics come from the f32 accumulator.
    h3, col_s1, col_s2 = conv_matmul(
        p2, w2, bias2, tile_m=tm2, tile_k=tk2, tile_n=tn2,
        compute_stats=True, m_valid=M2, out_dtype=operand_dtype)  # (8, M2p, N2p)

    # ------------- BatchNorm3d (training-mode batch statistics) --------------
    count = jnp.float32(8 * M2)                      # = N * D * H * W per channel
    s1 = col_s1[:outer_nc]
    s2 = col_s2[:outer_nc]
    mean = s1 / count
    var = jnp.maximum(s2 / count - mean * mean, 0.0)
    inv = jax.lax.rsqrt(var + 1e-5)
    scale = gamma.astype(jnp.float32) * inv                      # (outer_nc,)
    shift = beta.astype(jnp.float32) - mean * scale

    # BN apply is plain JAX so XLA fuses it into the (unavoidable) parity
    # interleave / NCDHW transpose / concat pass: one read of bf16 h3, one write.
    y = h3[:, :M2, :outer_nc].astype(jnp.float32) * scale + shift
    y = y.reshape(2, 2, 2, N, Dd, Hd, Wd, outer_nc)
    y = y.transpose(3, 4, 0, 5, 1, 6, 2, 7).reshape(N, D, H, W, outer_nc)
    y = y.transpose(0, 4, 1, 2, 3)                               # NCDHW
    return jnp.concatenate([y, x], axis=1)


# ----------------------------------------------------------------------------
# Pure-JAX reference (XLA convs, f32) for correctness checking
# ----------------------------------------------------------------------------
def reference_forward(x, W_down, b_down, W_up, b_up, gamma, beta):
    dn = ("NCDHW", "OIDHW", "NCDHW")
    h0 = jnp.where(x >= 0, x, 0.2 * x)
    h1 = jax.lax.conv_general_dilated(
        h0, W_down, (2, 2, 2), [(1, 1)] * 3, dimension_numbers=dn
    ) + b_down.reshape(1, -1, 1, 1, 1)
    h2 = jnp.maximum(h1, 0.0)
    W_eff = jnp.flip(W_up, axis=(2, 3, 4)).transpose(1, 0, 2, 3, 4)
    h3 = jax.lax.conv_general_dilated(
        h2, W_eff, (1, 1, 1), [(2, 2)] * 3, lhs_dilation=(2, 2, 2),
        dimension_numbers=dn
    ) + b_up.reshape(1, -1, 1, 1, 1)
    mean = h3.mean(axis=(0, 2, 3, 4), keepdims=True)
    var = ((h3 - mean) ** 2).mean(axis=(0, 2, 3, 4), keepdims=True)
    h4 = (h3 - mean) / jnp.sqrt(var + 1e-5) * gamma.reshape(1, -1, 1, 1, 1) \
        + beta.reshape(1, -1, 1, 1, 1)
    return jnp.concatenate([h4, x], axis=1)


# ----------------------------------------------------------------------------
if __name__ == "__main__":
    key = jax.random.PRNGKey(0)
    N, input_nc, inner_nc, outer_nc = 2, 4, 8, 4
    D = H = W = 8

    k_x, k_wd, k_bd, k_wu, k_bu = jax.random.split(key, 5)
    x = jax.random.normal(k_x, (N, input_nc, D, H, W), jnp.float32)
    # Conv3d(input_nc, inner_nc, 4): weight (inner_nc, input_nc, 4, 4, 4)
    W_down = 0.1 * jax.random.normal(k_wd, (inner_nc, input_nc, 4, 4, 4), jnp.float32)
    b_down = 0.1 * jax.random.normal(k_bd, (inner_nc,), jnp.float32)
    # ConvTranspose3d(inner_nc, outer_nc, 4): weight (inner_nc, outer_nc, 4, 4, 4)
    W_up = 0.1 * jax.random.normal(k_wu, (inner_nc, outer_nc, 4, 4, 4), jnp.float32)
    b_up = 0.1 * jax.random.normal(k_bu, (outer_nc,), jnp.float32)
    # BatchNorm3d(outer_nc, affine=True) default init: weight=1, bias=0
    gamma = jnp.ones((outer_nc,), jnp.float32)
    beta = jnp.zeros((outer_nc,), jnp.float32)

    ref = jax.block_until_ready(
        reference_forward(x, W_down, b_down, W_up, b_up, gamma, beta))

    # f32 MXU operands: tight check of the conv / parity / BN decomposition.
    fwd_f32 = jax.jit(functools.partial(unet_innermost_forward,
                                        operand_dtype=jnp.float32))
    out_f32 = jax.block_until_ready(fwd_f32(x, W_down, b_down, W_up, b_up, gamma, beta))
    assert out_f32.shape == (N, outer_nc + input_nc, D, H, W), out_f32.shape
    if not jnp.allclose(out_f32, ref, atol=1e-3, rtol=1e-3):
        raise AssertionError(
            f"f32 mismatch, max abs err = {jnp.max(jnp.abs(out_f32 - ref))}")

    # bf16 MXU operands (production path on v6e/v7x): looser tolerance.
    fwd_bf16 = jax.jit(functools.partial(unet_innermost_forward,
                                         operand_dtype=jnp.bfloat16))
    out = jax.block_until_ready(fwd_bf16(x, W_down, b_down, W_up, b_up, gamma, beta))
    assert out.shape == (N, outer_nc + input_nc, D, H, W), out.shape
    if not jnp.allclose(out, ref, atol=6e-2, rtol=6e-2):
        raise AssertionError(
            f"bf16 mismatch, max abs err = {jnp.max(jnp.abs(out - ref))}")

    print("KERNEL_OK")
</pallas_src>

<mosaic_0001>
module attributes {stable_mosaic.version = 11 : i64} {
  func.func @_conv_mm_kernel(%arg0: i32, %arg1: i32, %arg2: i32, %arg3: i32, %arg4: memref<1x128x256xf32, #tpu.memory_space<vmem>>, %arg5: memref<1x256x128xf32, #tpu.memory_space<vmem>>, %arg6: memref<1x128xf32, #tpu.memory_space<vmem>>, %arg7: memref<1x128x128xf32, #tpu.memory_space<vmem>>, %arg8: memref<128x128xf32, #tpu.memory_space<vmem>>) attributes {dimension_semantics = [#tpu.dimension_semantics<parallel>, #tpu.dimension_semantics<parallel>, #tpu.dimension_semantics<parallel>, #tpu.dimension_semantics<arbitrary>], iteration_bounds = array<i64: 1, 1, 1, 1>, scalar_prefetch = 0 : i64, scratch_operands = 1 : i64, tpu.core_type = #tpu.core_type<tc>, window_params = [{transform_indices = @transform_0, window_bounds = array<i64: 1, 128, 256>}, {transform_indices = @transform_1, window_bounds = array<i64: 1, 256, 128>}, {transform_indices = @transform_2, window_bounds = array<i64: 1, 128>}, {transform_indices = @transform_3, window_bounds = array<i64: 1, 128, 128>}]} {
    %c0_i32 = arith.constant 0 : i32
    %0 = arith.cmpi eq, %arg3, %c0_i32 : i32
    %1 = arith.extui %0 : i1 to i32
    %c0_i32_0 = arith.constant 0 : i32
    %2 = arith.cmpi ne, %1, %c0_i32_0 : i32
    scf.if %2 {
      %cst_14 = arith.constant 0.000000e+00 : f32
      %19 = vector.broadcast %cst_14 : f32 to vector<128x128xf32>
      %c0_15 = arith.constant 0 : index
      %c0_16 = arith.constant 0 : index
      %20 = vector.load %arg8[%c0_15, %c0_16] : memref<128x128xf32, #tpu.memory_space<vmem>>, vector<128x128xf32>
      tpu.vector_store %arg8[%c0_15, %c0_16], %19 {strides = array<i32>} : memref<128x128xf32, #tpu.memory_space<vmem>>, vector<128x128xf32>,
    } else {
    }
    %c0 = arith.constant 0 : index
    %c0_1 = arith.constant 0 : index
    %c0_2 = arith.constant 0 : index
    %3 = vector.load %arg4[%c0, %c0_1, %c0_2] : memref<1x128x256xf32, #tpu.memory_space<vmem>>, vector<1x128x256xf32>
    %4 = vector.shape_cast %3 : vector<1x128x256xf32> to vector<128x256xf32>
    %cst = arith.constant 0.000000e+00 : f32
    %5 = vector.broadcast %cst : f32 to vector<128x256xf32>
    %6 = arith.cmpf oge, %4, %5 : vector<128x256xf32>
    %cst_3 = arith.constant 2.000000e-01 : f32
    %7 = vector.broadcast %cst_3 : f32 to vector<128x256xf32>
    %8 = arith.mulf %4, %7 : vector<128x256xf32>
    %9 = arith.select %6, %4, %8 : vector<128x256xi1>, vector<128x256xf32>
    %c0_4 = arith.constant 0 : index
    %c0_5 = arith.constant 0 : index
    %10 = vector.load %arg8[%c0_4, %c0_5] : memref<128x128xf32, #tpu.memory_space<vmem>>, vector<128x128xf32>
    %c0_6 = arith.constant 0 : index
    %c0_7 = arith.constant 0 : index
    %c0_8 = arith.constant 0 : index
    %11 = vector.load %arg5[%c0_6, %c0_7, %c0_8] : memref<1x256x128xf32, #tpu.memory_space<vmem>>, vector<1x256x128xf32>
    %12 = vector.shape_cast %11 : vector<1x256x128xf32> to vector<256x128xf32>
    %cst_9 = arith.constant dense<0.000000e+00> : vector<128x128xf32>
    %13 = tpu.matmul %9, %12, %cst_9 {dimension_numbers = #tpu.dot_dimension_numbers<[1], [0], [0], [1], [0, 0, 1, 1], [], []>} : vector<128x256xf32>, vector<256x128xf32>, vector<128x128xf32> -> vector<128x128xf32>
    %14 = arith.addf %10, %13 : vector<128x128xf32>
    %c0_10 = arith.constant 0 : index
    %c0_11 = arith.constant 0 : index
    %15 = vector.load %arg8[%c0_10, %c0_11] : memref<128x128xf32, #tpu.memory_space<vmem>>, vector<128x128xf32>
    tpu.vector_store %arg8[%c0_10, %c0_11], %14 {strides = array<i32>} : memref<128x128xf32, #tpu.memory_space<vmem>>, vector<128x128xf32>,
    %c0_i32_12 = arith.constant 0 : i32
    %16 = arith.cmpi eq, %arg3, %c0_i32_12 : i32
    %17 = arith.extui %16 : i1 to i32
    %c0_i32_13 = arith.constant 0 : i32
    %18 = arith.cmpi ne, %17, %c0_i32_13 : i32
    scf.if %18 {
      %c0_14 = arith.constant 0 : index
      %c0_15 = arith.constant 0 : index
      %19 = vector.load %arg8[%c0_14, %c0_15] : memref<128x128xf32, #tpu.memory_space<vmem>>, vector<128x128xf32>
      %c0_16 = arith.constant 0 : index
      %c0_17 = arith.constant 0 : index
      %20 = vector.load %arg6[%c0_16, %c0_17] : memref<1x128xf32, #tpu.memory_space<vmem>>, vector<1x128xf32>
      %21 = vector.broadcast %20 : vector<1x128xf32> to vector<128x128xf32>
      %22 = arith.addf %19, %21 : vector<128x128xf32>
      %cst_18 = arith.constant 0.000000e+00 : f32
      %23 = vector.broadcast %cst_18 : f32 to vector<128x128xf32>
      %24 = arith.maximumf %22, %23 : vector<128x128xf32>
      %c0_19 = arith.constant 0 : index
      %c0_20 = arith.constant 0 : index
      %c0_21 = arith.constant 0 : index
      %25 = vector.load %arg7[%c0_19, %c0_20, %c0_21] : memref<1x128x128xf32, #tpu.memory_space<vmem>>, vector<1x128x128xf32>
      %26 = vector.shape_cast %25 : vector<1x128x128xf32> to vector<128x128xf32>
      %27 = vector.shape_cast %24 : vector<128x128xf32> to vector<1x128x128xf32>
      tpu.vector_store %arg7[%c0_19, %c0_20, %c0_21], %27 {strides = array<i32>} : memref<1x128x128xf32, #tpu.memory_space<vmem>>, vector<1x128x128xf32>,
    } else {
    }
    return
  }
  func.func @transform_0(%arg0: i32, %arg1: i32, %arg2: i32, %arg3: i32) -> (i32, i32, i32) {
    %c0_i32 = arith.constant 0 : i32
    return %arg2, %arg0, %arg3 : i32, i32, i32
  }
  func.func @transform_1(%arg0: i32, %arg1: i32, %arg2: i32, %arg3: i32) -> (i32, i32, i32) {
    %c0_i32 = arith.constant 0 : i32
    return %arg2, %arg3, %arg1 : i32, i32, i32
  }
  func.func @transform_2(%arg0: i32, %arg1: i32, %arg2: i32, %arg3: i32) -> (i32, i32) {
    %c0_i32 = arith.constant 0 : i32
    %c0_i32_0 = arith.constant 0 : i32
    return %c0_i32, %arg1 : i32, i32
  }
  func.func @transform_3(%arg0: i32, %arg1: i32, %arg2: i32, %arg3: i32) -> (i32, i32, i32) {
    %c0_i32 = arith.constant 0 : i32
    return %arg2, %arg0, %arg1 : i32, i32, i32
  }
}

module attributes {stable_mosaic.version = 11 : i64} {
  func.func @_conv_mm_kernel(%arg0: i32, %arg1: i32, %arg2: i32, %arg3: i32, %arg4: memref<1x128x1024xf32, #tpu.memory_space<vmem>>, %arg5: memref<1x1024x128xf32, #tpu.memory_space<vmem>>, %arg6: memref<1x128xf32, #tpu.memory_space<vmem>>, %arg7: memref<1x128x128xf32, #tpu.memory_space<vmem>>, %arg8: memref<1x1x1x128xf32, #tpu.memory_space<vmem>>, %arg9: memref<1x1x1x128xf32, #tpu.memory_space<vmem>>, %arg10: memref<128x128xf32, #tpu.memory_space<vmem>>) attributes {dimension_semantics = [#tpu.dimension_semantics<parallel>, #tpu.dimension_semantics<parallel>, #tpu.dimension_semantics<parallel>, #tpu.dimension_semantics<arbitrary>], iteration_bounds = array<i64: 1, 1, 8, 1>, scalar_prefetch = 0 : i64, scratch_operands = 1 : i64, tpu.core_type = #tpu.core_type<tc>, window_params = [{transform_indices = @transform_0, window_bounds = array<i64: 1, 128, 1024>}, {transform_indices = @transform_1, window_bounds = array<i64: 1, 1024, 128>}, {transform_indices = @transform_2, window_bounds = array<i64: 1, 128>}, {transform_indices = @transform_3, window_bounds = array<i64: 1, 128, 128>}, {transform_indices = @transform_4, window_bounds = array<i64: 1, 1, 1, 128>}, {transform_indices = @transform_5, window_bounds = array<i64: 1, 1, 1, 128>}]} {
    %c0_i32 = arith.constant 0 : i32
    %0 = arith.cmpi eq, %arg3, %c0_i32 : i32
    %1 = arith.extui %0 : i1 to i32
    %c0_i32_0 = arith.constant 0 : i32
    %2 = arith.cmpi ne, %1, %c0_i32_0 : i32
    scf.if %2 {
      %cst_12 = arith.constant 0.000000e+00 : f32
      %14 = vector.broadcast %cst_12 : f32 to vector<128x128xf32>
      %c0_13 = arith.constant 0 : index
      %c0_14 = arith.constant 0 : index
      %15 = vector.load %arg10[%c0_13, %c0_14] : memref<128x128xf32, #tpu.memory_space<vmem>>, vector<128x128xf32>
      tpu.vector_store %arg10[%c0_13, %c0_14], %14 {strides = array<i32>} : memref<128x128xf32, #tpu.memory_space<vmem>>, vector<128x128xf32>,
    } else {
    }
    %c0 = arith.constant 0 : index
    %c0_1 = arith.constant 0 : index
    %c0_2 = arith.constant 0 : index
    %3 = vector.load %arg4[%c0, %c0_1, %c0_2] : memref<1x128x1024xf32, #tpu.memory_space<vmem>>, vector<1x128x1024xf32>
    %4 = vector.shape_cast %3 : vector<1x128x1024xf32> to vector<128x1024xf32>
    %c0_3 = arith.constant 0 : index
    %c0_4 = arith.constant 0 : index
    %5 = vector.load %arg10[%c0_3, %c0_4] : memref<128x128xf32, #tpu.memory_space<vmem>>, vector<128x128xf32>
    %c0_5 = arith.constant 0 : index
    %c0_6 = arith.constant 0 : index
    %c0_7 = arith.constant 0 : index
    %6 = vector.load %arg5[%c0_5, %c0_6, %c0_7] : memref<1x1024x128xf32, #tpu.memory_space<vmem>>, vector<1x1024x128xf32>
    %7 = vector.shape_cast %6 : vector<1x1024x128xf32> to vector<1024x128xf32>
    %cst = arith.constant dense<0.000000e+00> : vector<128x128xf32>
    %8 = tpu.matmul %4, %7, %cst {dimension_numbers = #tpu.dot_dimension_numbers<[1], [0], [0], [1], [0, 0, 1, 1], [], []>} : vector<128x1024xf32>, vector<1024x128xf32>, vector<128x128xf32> -> vector<128x128xf32>
    %9 = arith.addf %5, %8 : vector<128x128xf32>
    %c0_8 = arith.constant 0 : index
    %c0_9 = arith.constant 0 : index
    %10 = vector.load %arg10[%c0_8, %c0_9] : memref<128x128xf32, #tpu.memory_space<vmem>>, vector<128x128xf32>
    tpu.vector_store %arg10[%c0_8, %c0_9], %9 {strides = array<i32>} : memref<128x128xf32, #tpu.memory_space<vmem>>, vector<128x128xf32>,
    %c0_i32_10 = arith.constant 0 : i32
    %11 = arith.cmpi eq, %arg3, %c0_i32_10 : i32
    %12 = arith.extui %11 : i1 to i32
    %c0_i32_11 = arith.constant 0 : i32
    %13 = arith.cmpi ne, %12, %c0_i32_11 : i32
    scf.if %13 {
      %c0_12 = arith.constant 0 : index
      %c0_13 = arith.constant 0 : index
      %14 = vector.load %arg10[%c0_12, %c0_13] : memref<128x128xf32, #tpu.memory_space<vmem>>, vector<128x128xf32>
      %c0_14 = arith.constant 0 : index
      %c0_15 = arith.constant 0 : index
      %15 = vector.load %arg6[%c0_14, %c0_15] : memref<1x128xf32, #tpu.memory_space<vmem>>, vector<1x128xf32>
      %16 = vector.broadcast %15 : vector<1x128xf32> to vector<128x128xf32>
      %17 = arith.addf %14, %16 : vector<128x128xf32>
      %c0_16 = arith.constant 0 : index
      %c0_17 = arith.constant 0 : index
      %c0_18 = arith.constant 0 : index
      %18 = vector.load %arg7[%c0_16, %c0_17, %c0_18] : memref<1x128x128xf32, #tpu.memory_space<vmem>>, vector<1x128x128xf32>
      %19 = vector.shape_cast %18 : vector<1x128x128xf32> to vector<128x128xf32>
      %20 = vector.shape_cast %17 : vector<128x128xf32> to vector<1x128x128xf32>
      tpu.vector_store %arg7[%c0_16, %c0_17, %c0_18], %20 {strides = array<i32>} : memref<1x128x128xf32, #tpu.memory_space<vmem>>, vector<1x128x128xf32>,
      %21 = tpu.iota {dimensions = array<i32: 0>} : vector<128x1xi32>
      %c128_i32 = arith.constant 128 : i32
      %22 = arith.muli %arg0, %c128_i32 : i32
      %23 = vector.broadcast %22 : i32 to vector<128x1xi32>
      %24 = arith.addi %21, %23 : vector<128x1xi32>
      %c128_i32_19 = arith.constant 128 : i32
      %25 = vector.broadcast %c128_i32_19 : i32 to vector<128x1xi32>
      %26 = arith.cmpi slt, %24, %25 : vector<128x1xi32>
      %cst_20 = arith.constant 0.000000e+00 : f32
      %27 = vector.shape_cast %26 : vector<128x1xi1> to vector<128x1xi1>
      %28 = vector.broadcast %27 : vector<128x1xi1> to vector<128x128xi1>
      %29 = vector.broadcast %cst_20 : f32 to vector<128x128xf32>
      %30 = arith.select %28, %17, %29 : vector<128x128xi1>, vector<128x128xf32>
      %cst_21 = arith.constant dense<0.000000e+00> : vector<128xf32>
      %31 = vector.multi_reduction <add>, %30, %cst_21 [0] : vector<128x128xf32> to vector<128xf32>
      %32 = vector.shape_cast %31 : vector<128xf32> to vector<1x128xf32>
      %c0_22 = arith.constant 0 : index
      %c0_23 = arith.constant 0 : index
      %c0_24 = arith.constant 0 : index
      %c0_25 = arith.constant 0 : index
      %33 = vector.load %arg8[%c0_22, %c0_23, %c0_24, %c0_25] : memref<1x1x1x128xf32, #tpu.memory_space<vmem>>, vector<1x1x1x128xf32>
      %34 = vector.shape_cast %33 : vector<1x1x1x128xf32> to vector<1x128xf32>
      %35 = vector.shape_cast %32 : vector<1x128xf32> to vector<1x1x1x128xf32>
      tpu.vector_store %arg8[%c0_22, %c0_23, %c0_24, %c0_25], %35 {strides = array<i32>} : memref<1x1x1x128xf32, #tpu.memory_space<vmem>>, vector<1x1x1x128xf32>,
      %36 = arith.mulf %30, %30 : vector<128x128xf32>
      %cst_26 = arith.constant dense<0.000000e+00> : vector<128xf32>
      %37 = vector.multi_reduction <add>, %36, %cst_26 [0] : vector<128x128xf32> to vector<128xf32>
      %38 = vector.shape_cast %37 : vector<128xf32> to vector<1x128xf32>
      %c0_27 = arith.constant 0 : index
      %c0_28 = arith.constant 0 : index
      %c0_29 = arith.constant 0 : index
      %c0_30 = arith.constant 0 : index
      %39 = vector.load %arg9[%c0_27, %c0_28, %c0_29, %c0_30] : memref<1x1x1x128xf32, #tpu.memory_space<vmem>>, vector<1x1x1x128xf32>
      %40 = vector.shape_cast %39 : vector<1x1x1x128xf32> to vector<1x128xf32>
      %41 = vector.shape_cast %38 : vector<1x128xf32> to vector<1x1x1x128xf32>
      tpu.vector_store %arg9[%c0_27, %c0_28, %c0_29, %c0_30], %41 {strides = array<i32>} : memref<1x1x1x128xf32, #tpu.memory_space<vmem>>, vector<1x1x1x128xf32>,
    } else {
    }
    return
  }
  func.func @transform_0(%arg0: i32, %arg1: i32, %arg2: i32, %arg3: i32) -> (i32, i32, i32) {
    %c0_i32 = arith.constant 0 : i32
    return %arg2, %arg0, %arg3 : i32, i32, i32
  }
  func.func @transform_1(%arg0: i32, %arg1: i32, %arg2: i32, %arg3: i32) -> (i32, i32, i32) {
    %c0_i32 = arith.constant 0 : i32
    return %arg2, %arg3, %arg1 : i32, i32, i32
  }
  func.func @transform_2(%arg0: i32, %arg1: i32, %arg2: i32, %arg3: i32) -> (i32, i32) {
    %c0_i32 = arith.constant 0 : i32
    %c0_i32_0 = arith.constant 0 : i32
    return %c0_i32, %arg1 : i32, i32
  }
  func.func @transform_3(%arg0: i32, %arg1: i32, %arg2: i32, %arg3: i32) -> (i32, i32, i32) {
    %c0_i32 = arith.constant 0 : i32
    return %arg2, %arg0, %arg1 : i32, i32, i32
  }
  func.func @transform_4(%arg0: i32, %arg1: i32, %arg2: i32, %arg3: i32) -> (i32, i32, i32, i32) {
    %c0_i32 = arith.constant 0 : i32
    %c0_i32_0 = arith.constant 0 : i32
    return %arg2, %arg0, %c0_i32, %arg1 : i32, i32, i32, i32
  }
  func.func @transform_5(%arg0: i32, %arg1: i32, %arg2: i32, %arg3: i32) -> (i32, i32, i32, i32) {
    %c0_i32 = arith.constant 0 : i32
    %c0_i32_0 = arith.constant 0 : i32
    return %arg2, %arg0, %c0_i32, %arg1 : i32, i32, i32, i32
  }
}

</mosaic_0001>

<llo_original>
// kernel: unet_innermost_forward.2
$region0: #{unet_innermost_forward.2}
  #allocation0 [shape = 'u32[]', space=smem, size = 0x4, offset = 0x4, fixed_abs, tag = 'smem constant byte address 0x4 - core index']
  #allocation1 [shape = 'u32[144,128]{1,0:T(1,128)}', space=vmem, size = 0x12000, scoped, tag = 'internal scratch']
  #allocation2 [shape = 'f32[128,128]{1,0:T(8,128)}', space=vmem, size = 0x10000, scoped, tag = 'scratch operand']
  %s0 = inlined_call_operand.vmem [shape: f32[1,128,256], index: 0, kind: input, shape index: {}]
  %s1 = inlined_call_operand.vmem [shape: f32[1,256,128], index: 1, kind: input, shape index: {}]
  %s2 = inlined_call_operand.vmem [shape: f32[1,128], index: 2, kind: input, shape index: {}]
  %s3 = inlined_call_operand.vmem [shape: f32[1,128,128], index: 3, kind: output, shape index: {}]
  %s4 = sld [smem:[#allocation0]]
  $region30: #{unet_innermost_forward.2} parent=0
    _
  %s6 = ssub.s32 1, %s4
  %s7 = scalar_select 0, %s6, %s4
  // Predicated region
  $region2: #{unet_innermost_forward.2} parent=0 // pred_check
    _
  $region3: #{unet_innermost_forward.2} parent=0 // pred_check_branch
    %9 = sbr.rel (0) target = $region5
  $region4: #{unet_innermost_forward.2} parent=0 // pred_region
    _
  $region5: #{unet_innermost_forward.2} parent=0 // pred_fallthru
    _
  // Predicated region
  $region6: #{unet_innermost_forward.2} parent=0 // pred_check
    _
  $region7: #{unet_innermost_forward.2} parent=0 // pred_check_branch
    %11 = sbr.rel (0) target = $region9
  $region8: #{unet_innermost_forward.2} parent=0 // pred_region
    _
  $region9: #{unet_innermost_forward.2} parent=0 // pred_fallthru
    _
  // Predicated region
  $region10: #{unet_innermost_forward.2} parent=0 // pred_check
    _
  $region11: #{unet_innermost_forward.2} parent=0 // pred_check_branch
    %13 = sbr.rel (0) target = $region13
  $region12: #{unet_innermost_forward.2} parent=0 // pred_region
    _
  $region13: #{unet_innermost_forward.2} parent=0 // pred_fallthru
    _
  %p14 = scmp.eq.s32.totalorder 0, 0
  // Predicated region
  $region14: #{unet_innermost_forward.2} parent=0 // pred_check
    %p15 = pneg %p14
  $region15: #{unet_innermost_forward.2} parent=0 // pred_check_branch
    %17 = sbr.rel (%p15) target = $region17
  $region16: #{unet_innermost_forward.2} parent=0 // pred_region
    %18 = vst [vmem:[#allocation2] sm:$0xff] 0.0
    %19 = vst [vmem:[#allocation2 + $0x8] sm:$0xff] 0.0
    %20 = vst [vmem:[#allocation2 + $0x10] sm:$0xff] 0.0
    %21 = vst [vmem:[#allocation2 + $0x18] sm:$0xff] 0.0
    %22 = vst [vmem:[#allocation2 + $0x20] sm:$0xff] 0.0
    %23 = vst [vmem:[#allocation2 + $0x28] sm:$0xff] 0.0
    %24 = vst [vmem:[#allocation2 + $0x30] sm:$0xff] 0.0
    %25 = vst [vmem:[#allocation2 + $0x38] sm:$0xff] 0.0
    %26 = vst [vmem:[#allocation2 + $0x40] sm:$0xff] 0.0
    %27 = vst [vmem:[#allocation2 + $0x48] sm:$0xff] 0.0
    %28 = vst [vmem:[#allocation2 + $0x50] sm:$0xff] 0.0
    %29 = vst [vmem:[#allocation2 + $0x58] sm:$0xff] 0.0
    %30 = vst [vmem:[#allocation2 + $0x60] sm:$0xff] 0.0
    %31 = vst [vmem:[#allocation2 + $0x68] sm:$0xff] 0.0
    %32 = vst [vmem:[#allocation2 + $0x70] sm:$0xff] 0.0
    %33 = vst [vmem:[#allocation2 + $0x78] sm:$0xff] 0.0
  $region17: #{unet_innermost_forward.2} parent=0 // pred_fallthru
    _
  %v34 = vld [vmem:[%s0] sm:$0xff]
  %v35 = vld [vmem:[%s0 + $0x8] sm:$0xff]
  %v36 = vld [vmem:[%s0 + $0x10] sm:$0xff]
  %v37 = vld [vmem:[%s0 + $0x18] sm:$0xff]
  %v38 = vld [vmem:[%s0 + $0x20] sm:$0xff]
  %v39 = vld [vmem:[%s0 + $0x28] sm:$0xff]
  %v40 = vld [vmem:[%s0 + $0x30] sm:$0xff]
  %v41 = vld [vmem:[%s0 + $0x38] sm:$0xff]
  %v42 = vld [vmem:[%s0 + $0x40] sm:$0xff]
  %v43 = vld [vmem:[%s0 + $0x48] sm:$0xff]
  %v44 = vld [vmem:[%s0 + $0x50] sm:$0xff]
  %v45 = vld [vmem:[%s0 + $0x58] sm:$0xff]
  %v46 = vld [vmem:[%s0 + $0x60] sm:$0xff]
  %v47 = vld [vmem:[%s0 + $0x68] sm:$0xff]
  %v48 = vld [vmem:[%s0 + $0x70] sm:$0xff]
  %v49 = vld [vmem:[%s0 + $0x78] sm:$0xff]
  %v50 = vld [vmem:[%s0 + $0x80] sm:$0xff]
  %v51 = vld [vmem:[%s0 + $0x88] sm:$0xff]
  %v52 = vld [vmem:[%s0 + $0x90] sm:$0xff]
  %v53 = vld [vmem:[%s0 + $0x98] sm:$0xff]
  %v54 = vld [vmem:[%s0 + $0xa0] sm:$0xff]
  %v55 = vld [vmem:[%s0 + $0xa8] sm:$0xff]
  %v56 = vld [vmem:[%s0 + $0xb0] sm:$0xff]
  %v57 = vld [vmem:[%s0 + $0xb8] sm:$0xff]
  %v58 = vld [vmem:[%s0 + $0xc0] sm:$0xff]
  %v59 = vld [vmem:[%s0 + $0xc8] sm:$0xff]
  %v60 = vld [vmem:[%s0 + $0xd0] sm:$0xff]
  %v61 = vld [vmem:[%s0 + $0xd8] sm:$0xff]
  %v62 = vld [vmem:[%s0 + $0xe0] sm:$0xff]
  %v63 = vld [vmem:[%s0 + $0xe8] sm:$0xff]
  %v64 = vld [vmem:[%s0 + $0xf0] sm:$0xff]
  %v65 = vld [vmem:[%s0 + $0xf8] sm:$0xff]
  %vm66 = vcmp.ge.f32.partialorder %v34, 0.0
  %vm67 = vcmp.ge.f32.partialorder %v35, 0.0
  %vm68 = vcmp.ge.f32.partialorder %v36, 0.0
  %vm69 = vcmp.ge.f32.partialorder %v37, 0.0
  %vm70 = vcmp.ge.f32.partialorder %v38, 0.0
  %vm71 = vcmp.ge.f32.partialorder %v39, 0.0
  %vm72 = vcmp.ge.f32.partialorder %v40, 0.0
  %vm73 = vcmp.ge.f32.partialorder %v41, 0.0
  %vm74 = vcmp.ge.f32.partialorder %v42, 0.0
  %vm75 = vcmp.ge.f32.partialorder %v43, 0.0
  %vm76 = vcmp.ge.f32.partialorder %v44, 0.0
  %vm77 = vcmp.ge.f32.partialorder %v45, 0.0
  %vm78 = vcmp.ge.f32.partialorder %v46, 0.0
  %vm79 = vcmp.ge.f32.partialorder %v47, 0.0
  %vm80 = vcmp.ge.f32.partialorder %v48, 0.0
  %vm81 = vcmp.ge.f32.partialorder %v49, 0.0
  %vm82 = vcmp.ge.f32.partialorder %v50, 0.0
  %vm83 = vcmp.ge.f32.partialorder %v51, 0.0
  %vm84 = vcmp.ge.f32.partialorder %v52, 0.0
  %vm85 = vcmp.ge.f32.partialorder %v53, 0.0
  %vm86 = vcmp.ge.f32.partialorder %v54, 0.0
  %vm87 = vcmp.ge.f32.partialorder %v55, 0.0
  %vm88 = vcmp.ge.f32.partialorder %v56, 0.0
  %vm89 = vcmp.ge.f32.partialorder %v57, 0.0
  %vm90 = vcmp.ge.f32.partialorder %v58, 0.0
  %vm91 = vcmp.ge.f32.partialorder %v59, 0.0
  %vm92 = vcmp.ge.f32.partialorder %v60, 0.0
  %vm93 = vcmp.ge.f32.partialorder %v61, 0.0
  %vm94 = vcmp.ge.f32.partialorder %v62, 0.0
  %vm95 = vcmp.ge.f32.partialorder %v63, 0.0
  %vm96 = vcmp.ge.f32.partialorder %v64, 0.0
  %vm97 = vcmp.ge.f32.partialorder %v65, 0.0
  %v98 = vmul.f32 %v34, 0.2
  %v99 = vmul.f32 %v35, 0.2
  %v100 = vmul.f32 %v36, 0.2
  %v101 = vmul.f32 %v37, 0.2
  %v102 = vmul.f32 %v38, 0.2
  %v103 = vmul.f32 %v39, 0.2
  %v104 = vmul.f32 %v40, 0.2
  %v105 = vmul.f32 %v41, 0.2
  %v106 = vmul.f32 %v42, 0.2
  %v107 = vmul.f32 %v43, 0.2
  %v108 = vmul.f32 %v44, 0.2
  %v109 = vmul.f32 %v45, 0.2
  %v110 = vmul.f32 %v46, 0.2
  %v111 = vmul.f32 %v47, 0.2
  %v112 = vmul.f32 %v48, 0.2
  %v113 = vmul.f32 %v49, 0.2
  %v114 = vmul.f32 %v50, 0.2
  %v115 = vmul.f32 %v51, 0.2
  %v116 = vmul.f32 %v52, 0.2
  %v117 = vmul.f32 %v53, 0.2
  %v118 = vmul.f32 %v54, 0.2
  %v119 = vmul.f32 %v55, 0.2
  %v120 = vmul.f32 %v56, 0.2
  %v121 = vmul.f32 %v57, 0.2
  %v122 = vmul.f32 %v58, 0.2
  %v123 = vmul.f32 %v59, 0.2
  %v124 = vmul.f32 %v60, 0.2
  %v125 = vmul.f32 %v61, 0.2
  %v126 = vmul.f32 %v62, 0.2
  %v127 = vmul.f32 %v63, 0.2
  %v128 = vmul.f32 %v64, 0.2
  %v129 = vmul.f32 %v65, 0.2
  %v130 = vsel %vm66, %v34, %v98
  %v131 = vsel %vm67, %v35, %v99
  %v132 = vsel %vm68, %v36, %v100
  %v133 = vsel %vm69, %v37, %v101
  %v134 = vsel %vm70, %v38, %v102
  %v135 = vsel %vm71, %v39, %v103
  %v136 = vsel %vm72, %v40, %v104
  %v137 = vsel %vm73, %v41, %v105
  %v138 = vsel %vm74, %v42, %v106
  %v139 = vsel %vm75, %v43, %v107
  %v140 = vsel %vm76, %v44, %v108
  %v141 = vsel %vm77, %v45, %v109
  %v142 = vsel %vm78, %v46, %v110
  %v143 = vsel %vm79, %v47, %v111
  %v144 = vsel %vm80, %v48, %v112
  %v145 = vsel %vm81, %v49, %v113
  %v146 = vsel %vm82, %v50, %v114
  %v147 = vsel %vm83, %v51, %v115
  %v148 = vsel %vm84, %v52, %v116
  %v149 = vsel %vm85, %v53, %v117
  %v150 = vsel %vm86, %v54, %v118
  %v151 = vsel %vm87, %v55, %v119
  %v152 = vsel %vm88, %v56, %v120
  %v153 = vsel %vm89, %v57, %v121
  %v154 = vsel %vm90, %v58, %v122
  %v155 = vsel %vm91, %v59, %v123
  %v156 = vsel %vm92, %v60, %v124
  %v157 = vsel %vm93, %v61, %v125
  %v158 = vsel %vm94, %v62, %v126
  %v159 = vsel %vm95, %v63, %v127
  %v160 = vsel %vm96, %v64, %v128
  %v161 = vsel %vm97, %v65, %v129
  %v162 = vld [vmem:[#allocation2] sm:$0xff]
  %v163 = vld [vmem:[#allocation2 + $0x8] sm:$0xff]
  %v164 = vld [vmem:[#allocation2 + $0x10] sm:$0xff]
  %v165 = vld [vmem:[#allocation2 + $0x18] sm:$0xff]
  %v166 = vld [vmem:[#allocation2 + $0x20] sm:$0xff]
  %v167 = vld [vmem:[#allocation2 + $0x28] sm:$0xff]
  %v168 = vld [vmem:[#allocation2 + $0x30] sm:$0xff]
  %v169 = vld [vmem:[#allocation2 + $0x38] sm:$0xff]
  %v170 = vld [vmem:[#allocation2 + $0x40] sm:$0xff]
  %v171 = vld [vmem:[#allocation2 + $0x48] sm:$0xff]
  %v172 = vld [vmem:[#allocation2 + $0x50] sm:$0xff]
  %v173 = vld [vmem:[#allocation2 + $0x58] sm:$0xff]
  %v174 = vld [vmem:[#allocation2 + $0x60] sm:$0xff]
  %v175 = vld [vmem:[#allocation2 + $0x68] sm:$0xff]
  %v176 = vld [vmem:[#allocation2 + $0x70] sm:$0xff]
  %v177 = vld [vmem:[#allocation2 + $0x78] sm:$0xff]
  %v178 = vld [vmem:[%s1] sm:$0xff]
  %v179 = vld [vmem:[%s1 + $0x8] sm:$0xff]
  %v180 = vld [vmem:[%s1 + $0x10] sm:$0xff]
  %v181 = vld [vmem:[%s1 + $0x18] sm:$0xff]
  %v182 = vld [vmem:[%s1 + $0x20] sm:$0xff]
  %v183 = vld [vmem:[%s1 + $0x28] sm:$0xff]
  %v184 = vld [vmem:[%s1 + $0x30] sm:$0xff]
  %v185 = vld [vmem:[%s1 + $0x38] sm:$0xff]
  %v186 = vld [vmem:[%s1 + $0x40] sm:$0xff]
  %v187 = vld [vmem:[%s1 + $0x48] sm:$0xff]
  %v188 = vld [vmem:[%s1 + $0x50] sm:$0xff]
  %v189 = vld [vmem:[%s1 + $0x58] sm:$0xff]
  %v190 = vld [vmem:[%s1 + $0x60] sm:$0xff]
  %v191 = vld [vmem:[%s1 + $0x68] sm:$0xff]
  %v192 = vld [vmem:[%s1 + $0x70] sm:$0xff]
  %v193 = vld [vmem:[%s1 + $0x78] sm:$0xff]
  %v194 = vld [vmem:[%s1 + $0x80] sm:$0xff]
  %v195 = vld [vmem:[%s1 + $0x88] sm:$0xff]
  %v196 = vld [vmem:[%s1 + $0x90] sm:$0xff]
  %v197 = vld [vmem:[%s1 + $0x98] sm:$0xff]
  %v198 = vld [vmem:[%s1 + $0xa0] sm:$0xff]
  %v199 = vld [vmem:[%s1 + $0xa8] sm:$0xff]
  %v200 = vld [vmem:[%s1 + $0xb0] sm:$0xff]
  %v201 = vld [vmem:[%s1 + $0xb8] sm:$0xff]
  %v202 = vld [vmem:[%s1 + $0xc0] sm:$0xff]
  %v203 = vld [vmem:[%s1 + $0xc8] sm:$0xff]
  %v204 = vld [vmem:[%s1 + $0xd0] sm:$0xff]
  %v205 = vld [vmem:[%s1 + $0xd8] sm:$0xff]
  %v206 = vld [vmem:[%s1 + $0xe0] sm:$0xff]
  %v207 = vld [vmem:[%s1 + $0xe8] sm:$0xff]
  %v208 = vld [vmem:[%s1 + $0xf0] sm:$0xff]
  %v209 = vld [vmem:[%s1 + $0xf8] sm:$0xff]
  %210 = vmatprep.subr.mxu0 0.0
  %211 = vmatpush1.msra.mxu0 %v178
  %212 = vmatprep.subr.mxu0 0.0
  %213 = vmatpush1.msra.mxu0 %v179
  %214 = vmatprep.subr.mxu0 0.0
  %215 = vmatpush1.msra.mxu0 %v180
  %216 = vmatprep.subr.mxu0 0.0
  %217 = vmatpush1.msra.mxu0 %v181
  %218 = vmatprep.subr.mxu0 0.0
  %219 = vmatpush1.msra.mxu0 %v182
  %220 = vmatprep.subr.mxu0 0.0
  %221 = vmatpush1.msra.mxu0 %v183
  %222 = vmatprep.subr.mxu0 0.0
  %223 = vmatpush1.msra.mxu0 %v184
  %224 = vmatprep.subr.mxu0 0.0
  %225 = vmatpush1.msra.mxu0 %v185
  %226 = vmatprep.subr.mxu0 0.0
  %227 = vmatpush1.msra.mxu0 %v186
  %228 = vmatprep.subr.mxu0 0.0
  %229 = vmatpush1.msra.mxu0 %v187
  %230 = vmatprep.subr.mxu0 0.0
  %231 = vmatpush1.msra.mxu0 %v188
  %232 = vmatprep.subr.mxu0 0.0
  %233 = vmatpush1.msra.mxu0 %v189
  %234 = vmatprep.subr.mxu0 0.0
  %235 = vmatpush1.msra.mxu0 %v190
  %236 = vmatprep.subr.mxu0 0.0
  %237 = vmatpush1.msra.mxu0 %v191
  %238 = vmatprep.subr.mxu0 0.0
  %239 = vmatpush1.msra.mxu0 %v192
  %240 = vmatprep.subr.mxu0 0.0
  %241 = vmatpush1.msra.mxu0 %v193
  %242 = vmatprep.subr.mxu0 0.0
  %243 = vmatpush1.msra.mxu0 %v194
  %244 = vmatprep.subr.mxu0 0.0
  %245 = vmatpush1.msra.mxu0 %v195
  %246 = vmatprep.subr.mxu0 0.0
  %247 = vmatpush1.msra.mxu0 %v196
  %248 = vmatprep.subr.mxu0 0.0
  %249 = vmatpush1.msra.mxu0 %v197
  %250 = vmatprep.subr.mxu0 0.0
  %251 = vmatpush1.msra.mxu0 %v198
  %252 = vmatprep.subr.mxu0 0.0
  %253 = vmatpush1.msra.mxu0 %v199
  %254 = vmatprep.subr.mxu0 0.0
  %255 = vmatpush1.msra.mxu0 %v200
  %256 = vmatprep.subr.mxu0 0.0
  %257 = vmatpush1.msra.mxu0 %v201
  %258 = vmatprep.subr.mxu0 0.0
  %259 = vmatpush1.msra.mxu0 %v202
  %260 = vmatprep.subr.mxu0 0.0
  %261 = vmatpush1.msra.mxu0 %v203
  %262 = vmatprep.subr.mxu0 0.0
  %263 = vmatpush1.msra.mxu0 %v204
  %264 = vmatprep.subr.mxu0 0.0
  %265 = vmatpush1.msra.mxu0 %v205
  %266 = vmatprep.subr.mxu0 0.0
  %267 = vmatpush1.msra.mxu0 %v206
  %268 = vmatprep.subr.mxu0 0.0
  %269 = vmatpush1.msra.mxu0 %v207
  %270 = vmatprep.subr.mxu0 0.0
  %271 = vmatpush1.msra.mxu0 %v208
  %272 = vmatprep.subr.mxu0 0.0
  %273 = vmatpush1.msra.mxu0 %v209
  %274 = vmatprep.mubr.f32.mxu0 %v131
  %275 = vmatmul.mubr.f32.gmra.mrb[0].mxu0 %v130
  %v276 = vpop.f32.mrb[0].mxu0
  %v277 = vadd.f32 0.0, %v276
  %v278 = vpop.f32.mrb[0].mxu0
  %279 = vmatprep.mubr.f32.mxu0 %v133
  %280 = vmatmul.mubr.f32.gmra.mrb[0].mxu0 %v132
  %v281 = vpop.f32.mrb[0].mxu0
  %v282 = vadd.f32 0.0, %v281
  %v283 = vpop.f32.mrb[0].mxu0
  %284 = vmatprep.mubr.f32.mxu0 %v135
  %285 = vmatmul.mubr.f32.gmra.mrb[0].mxu0 %v134
  %v286 = vpop.f32.mrb[0].mxu0
  %v287 = vadd.f32 0.0, %v286
  %v288 = vpop.f32.mrb[0].mxu0
  %289 = vmatprep.mubr.f32.mxu0 %v137
  %290 = vmatmul.mubr.f32.gmra.mrb[0].mxu0 %v136
  %v291 = vpop.f32.mrb[0].mxu0
  %v292 = vadd.f32 0.0, %v291
  %v293 = vpop.f32.mrb[0].mxu0
  %294 = vmatprep.mubr.f32.mxu0 %v139
  %295 = vmatmul.mubr.f32.gmra.mrb[0].mxu0 %v138
  %v296 = vpop.f32.mrb[0].mxu0
  %v297 = vadd.f32 0.0, %v296
  %v298 = vpop.f32.mrb[0].mxu0
  %299 = vmatprep.mubr.f32.mxu0 %v141
  %300 = vmatmul.mubr.f32.gmra.mrb[0].mxu0 %v140
  %v301 = vpop.f32.mrb[0].mxu0
  %v302 = vadd.f32 0.0, %v301
  %v303 = vpop.f32.mrb[0].mxu0
  %304 = vmatprep.mubr.f32.mxu0 %v143
  %305 = vmatmul.mubr.f32.gmra.mrb[0].mxu0 %v142
  %v306 = vpop.f32.mrb[0].mxu0
  %v307 = vadd.f32 0.0, %v306
  %v308 = vpop.f32.mrb[0].mxu0
  %309 = vmatprep.mubr.f32.mxu0 %v145
  %310 = vmatmul.mubr.f32.gmra.mrb[0].mxu0 %v144
  %v311 = vpop.f32.mrb[0].mxu0
  %v312 = vadd.f32 0.0, %v311
  %v313 = vpop.f32.mrb[0].mxu0
  %314 = vmatprep.mubr.f32.mxu0 %v147
  %315 = vmatmul.mubr.f32.gmra.mrb[0].mxu0 %v146
  %v316 = vpop.f32.mrb[0].mxu0
  %v317 = vadd.f32 0.0, %v316
  %v318 = vpop.f32.mrb[0].mxu0
  %319 = vmatprep.mubr.f32.mxu0 %v149
  %320 = vmatmul.mubr.f32.gmra.mrb[0].mxu0 %v148
  %v321 = vpop.f32.mrb[0].mxu0
  %v322 = vadd.f32 0.0, %v321
  %v323 = vpop.f32.mrb[0].mxu0
  %324 = vmatprep.mubr.f32.mxu0 %v151
  %325 = vmatmul.mubr.f32.gmra.mrb[0].mxu0 %v150
  %v326 = vpop.f32.mrb[0].mxu0
  %v327 = vadd.f32 0.0, %v326
  %v328 = vpop.f32.mrb[0].mxu0
  %329 = vmatprep.mubr.f32.mxu0 %v153
  %330 = vmatmul.mubr.f32.gmra.mrb[0].mxu0 %v152
  %v331 = vpop.f32.mrb[0].mxu0
  %v332 = vadd.f32 0.0, %v331
  %v333 = vpop.f32.mrb[0].mxu0
  %334 = vmatprep.mubr.f32.mxu0 %v155
  %335 = vmatmul.mubr.f32.gmra.mrb[0].mxu0 %v154
  %v336 = vpop.f32.mrb[0].mxu0
  %v337 = vadd.f32 0.0, %v336
  %v338 = vpop.f32.mrb[0].mxu0
  %339 = vmatprep.mubr.f32.mxu0 %v157
  %340 = vmatmul.mubr.f32.gmra.mrb[0].mxu0 %v156
  %v341 = vpop.f32.mrb[0].mxu0
  %v342 = vadd.f32 0.0, %v341
  %v343 = vpop.f32.mrb[0].mxu0
  %344 = vmatprep.mubr.f32.mxu0 %v159
  %345 = vmatmul.mubr.f32.gmra.mrb[0].mxu0 %v158
  %v346 = vpop.f32.mrb[0].mxu0
  %v347 = vadd.f32 0.0, %v346
  %v348 = vpop.f32.mrb[0].mxu0
  %349 = vmatprep.mubr.f32.mxu0 %v161
  %350 = vmatmul.mubr.f32.gmra.mrb[0].mxu0 %v160
  %v351 = vpop.f32.mrb[0].mxu0
  %v352 = vadd.f32 0.0, %v351
  %v353 = vpop.f32.mrb[0].mxu0
  %354 = vdwg.mxu0
  %v355 = vadd.f32 %v162, %v277
  %v356 = vadd.f32 %v163, %v282
  %v357 = vadd.f32 %v164, %v287
  %v358 = vadd.f32 %v165, %v292
  %v359 = vadd.f32 %v166, %v297
  %v360 = vadd.f32 %v167, %v302
  %v361 = vadd.f32 %v168, %v307
  %v362 = vadd.f32 %v169, %v312
  %v363 = vadd.f32 %v170, %v317
  %v364 = vadd.f32 %v171, %v322
  %v365 = vadd.f32 %v172, %v327
  %v366 = vadd.f32 %v173, %v332
  %v367 = vadd.f32 %v174, %v337
  %v368 = vadd.f32 %v175, %v342
  %v369 = vadd.f32 %v176, %v347
  %v370 = vadd.f32 %v177, %v352
  %371 = vst [vmem:[#allocation2] sm:$0xff] %v355
  %372 = vst [vmem:[#allocation2 + $0x8] sm:$0xff] %v356
  %373 = vst [vmem:[#allocation2 + $0x10] sm:$0xff] %v357
  %374 = vst [vmem:[#allocation2 + $0x18] sm:$0xff] %v358
  %375 = vst [vmem:[#allocation2 + $0x20] sm:$0xff] %v359
  %376 = vst [vmem:[#allocation2 + $0x28] sm:$0xff] %v360
  %377 = vst [vmem:[#allocation2 + $0x30] sm:$0xff] %v361
  %378 = vst [vmem:[#allocation2 + $0x38] sm:$0xff] %v362
  %379 = vst [vmem:[#allocation2 + $0x40] sm:$0xff] %v363
  %380 = vst [vmem:[#allocation2 + $0x48] sm:$0xff] %v364
  %381 = vst [vmem:[#allocation2 + $0x50] sm:$0xff] %v365
  %382 = vst [vmem:[#allocation2 + $0x58] sm:$0xff] %v366
  %383 = vst [vmem:[#allocation2 + $0x60] sm:$0xff] %v367
  %384 = vst [vmem:[#allocation2 + $0x68] sm:$0xff] %v368
  %385 = vst [vmem:[#allocation2 + $0x70] sm:$0xff] %v369
  %386 = vst [vmem:[#allocation2 + $0x78] sm:$0xff] %v370
  // Predicated region
  $region18: #{unet_innermost_forward.2} parent=0 // pred_check
    %p387 = pneg %p14
  $region19: #{unet_innermost_forward.2} parent=0 // pred_check_branch
    %389 = sbr.rel (%p387) target = $region21
  $region20: #{unet_innermost_forward.2} parent=0 // pred_region
    %v390 = vld [vmem:[#allocation2] sm:$0xff]
    %v391 = vld [vmem:[#allocation2 + $0x8] sm:$0xff]
    %v392 = vld [vmem:[#allocation2 + $0x10] sm:$0xff]
    %v393 = vld [vmem:[#allocation2 + $0x18] sm:$0xff]
    %v394 = vld [vmem:[#allocation2 + $0x20] sm:$0xff]
    %v395 = vld [vmem:[#allocation2 + $0x28] sm:$0xff]
    %v396 = vld [vmem:[#allocation2 + $0x30] sm:$0xff]
    %v397 = vld [vmem:[#allocation2 + $0x38] sm:$0xff]
    %v398 = vld [vmem:[#allocation2 + $0x40] sm:$0xff]
    %v399 = vld [vmem:[#allocation2 + $0x48] sm:$0xff]
    %v400 = vld [vmem:[#allocation2 + $0x50] sm:$0xff]
    %v401 = vld [vmem:[#allocation2 + $0x58] sm:$0xff]
    %v402 = vld [vmem:[#allocation2 + $0x60] sm:$0xff]
    %v403 = vld [vmem:[#allocation2 + $0x68] sm:$0xff]
    %v404 = vld [vmem:[#allocation2 + $0x70] sm:$0xff]
    %v405 = vld [vmem:[#allocation2 + $0x78] sm:$0xff]
    %v406 = vld [vmem:[%s2] sm:$0x1]
    %v408 = vlaneseq
    %v409 = vshrl.u32 %v408, 7
    %v410 = vsub.s32 0, %v409
    %v411 = vrot.slane %v406, %v410
    %v413 = vadd.f32 %v390, %v411
    %v414 = vadd.f32 %v391, %v411
    %v415 = vadd.f32 %v392, %v411
    %v416 = vadd.f32 %v393, %v411
    %v417 = vadd.f32 %v394, %v411
    %v418 = vadd.f32 %v395, %v411
    %v419 = vadd.f32 %v396, %v411
    %v420 = vadd.f32 %v397, %v411
    %v421 = vadd.f32 %v398, %v411
    %v422 = vadd.f32 %v399, %v411
    %v423 = vadd.f32 %v400, %v411
    %v424 = vadd.f32 %v401, %v411
    %v425 = vadd.f32 %v402, %v411
    %v426 = vadd.f32 %v403, %v411
    %v427 = vadd.f32 %v404, %v411
    %v428 = vadd.f32 %v405, %v411
    %v429 = vmax.f32 %v413, 0.0
    %v430 = vmax.f32 %v414, 0.0
    %v431 = vmax.f32 %v415, 0.0
    %v432 = vmax.f32 %v416, 0.0
    %v433 = vmax.f32 %v417, 0.0
    %v434 = vmax.f32 %v418, 0.0
    %v435 = vmax.f32 %v419, 0.0
    %v436 = vmax.f32 %v420, 0.0
    %v437 = vmax.f32 %v421, 0.0
    %v438 = vmax.f32 %v422, 0.0
    %v439 = vmax.f32 %v423, 0.0
    %v440 = vmax.f32 %v424, 0.0
    %v441 = vmax.f32 %v425, 0.0
    %v442 = vmax.f32 %v426, 0.0
    %v443 = vmax.f32 %v427, 0.0
    %v444 = vmax.f32 %v428, 0.0
    %445 = vst [vmem:[%s3] sm:$0xff] %v429
    %446 = vst [vmem:[%s3 + $0x8] sm:$0xff] %v430
    %447 = vst [vmem:[%s3 + $0x10] sm:$0xff] %v431
    %448 = vst [vmem:[%s3 + $0x18] sm:$0xff] %v432
    %449 = vst [vmem:[%s3 + $0x20] sm:$0xff] %v433
    %450 = vst [vmem:[%s3 + $0x28] sm:$0xff] %v434
    %451 = vst [vmem:[%s3 + $0x30] sm:$0xff] %v435
    %452 = vst [vmem:[%s3 + $0x38] sm:$0xff] %v436
    %453 = vst [vmem:[%s3 + $0x40] sm:$0xff] %v437
    %454 = vst [vmem:[%s3 + $0x48] sm:$0xff] %v438
    %455 = vst [vmem:[%s3 + $0x50] sm:$0xff] %v439
    %456 = vst [vmem:[%s3 + $0x58] sm:$0xff] %v440
    %457 = vst [vmem:[%s3 + $0x60] sm:$0xff] %v441
    %458 = vst [vmem:[%s3 + $0x68] sm:$0xff] %v442
    %459 = vst [vmem:[%s3 + $0x70] sm:$0xff] %v443
    %460 = vst [vmem:[%s3 + $0x78] sm:$0xff] %v444
  $region21: #{unet_innermost_forward.2} parent=0 // pred_fallthru
    _
  // Predicated region
  $region22: #{unet_innermost_forward.2} parent=0 // pred_check
    _
  $region23: #{unet_innermost_forward.2} parent=0 // pred_check_branch
    %462 = sbr.rel (0) target = $region25
  $region24: #{unet_innermost_forward.2} parent=0 // pred_region
    _
  $region25: #{unet_innermost_forward.2} parent=0 // pred_fallthru
    _
  // Predicated region
  $region26: #{unet_innermost_forward.2} parent=0 // pred_check
    _
  $region27: #{unet_innermost_forward.2} parent=0 // pred_check_branch
    %464 = sbr.rel (0) target = $region29
  $region28: #{unet_innermost_forward.2} parent=0 // pred_region
    _
  $region29: #{unet_innermost_forward.2} parent=0 // pred_fallthru
    _

// kernel: unet_innermost_forward.3
$region0: #{unet_innermost_forward.3}
  #allocation0 [shape = 'u32[]', space=smem, size = 0x4, offset = 0x4, fixed_abs, tag = 'smem constant byte address 0x4 - core index']
  #allocation1 [shape = 'u32[144,128]{1,0:T(1,128)}', space=vmem, size = 0x12000, scoped, tag = 'internal scratch']
  #allocation2 [shape = 'f32[128,128]{1,0:T(8,128)}', space=vmem, size = 0x10000, scoped, tag = 'scratch operand']
  %s0 = inlined_call_operand.vmem [shape: f32[8,128,1024], index: 0, kind: input, shape index: {}]
  %s1 = inlined_call_operand.vmem [shape: f32[8,1024,128], index: 1, kind: input, shape index: {}]
  %s2 = inlined_call_operand.vmem [shape: f32[1,128], index: 2, kind: input, shape index: {}]
  %s3 = inlined_call_operand.vmem [shape: f32[8,128,128], index: 3, kind: output, shape index: {0}]
  %s4 = inlined_call_operand.vmem [shape: f32[8,1,1,128], index: 4, kind: output, shape index: {1}]
  %s5 = inlined_call_operand.vmem [shape: f32[8,1,1,128], index: 5, kind: output, shape index: {2}]
  %6 = xla_tuple %s3, %s4, %s5
  %s7 = sld [smem:[#allocation0]]
  $region69: #{unet_innermost_forward.3} parent=0
    _
  %s9 = ssub.s32 1, %s7
  %s10 = scalar_select 0, %s9, %s7
  loop: start=0, step=1, limit=10
  $region2: #{unet_innermost_forward.3} parent=0 // loop_pre_header
    _
  $region3: #{unet_innermost_forward.3} parent=0 // loop_header
    %s12 = sphi 0, %s16
    %p13 = scmp.ge.s32.totalorder %s12, 10
    %s19 = sphi 0, %s45
    %s20 = sphi 0, %s41
    %s21 = sphi 0, %s37
    %s22 = sphi 0, %s33
    %s23 = sphi 0, %s19
    %s24 = sphi 0, %s20
    %s25 = sphi 0, %s21
    %s26 = sphi 0, %s22
    %s27 = sphi 0, %s23
    %s28 = sphi 0, %s24
    %s29 = sphi 0, %s25
    %s30 = sphi 0, %s26
    %s52 = sphi 0, %s54
    %s55 = sphi 0, %s52
    %s56 = sphi 0, %s55
    %s72 = sphi 0, %s56
    %s82 = sphi 0, %s84
    %s85 = sphi 0, %s82
    %s86 = sphi 0, %s85
    %s102 = sphi 0, %s86
    %s108 = sphi 0, %s110
    %s111 = sphi 0, %s108
    %s112 = sphi 0, %s111
    %s128 = sphi 0, %s112
    %s138 = sphi 0, %s140
    %s141 = sphi 0, %s138
    %s142 = sphi 0, %s141
    %s158 = sphi 0, %s142
    %s168 = sphi 0, %s170
    %s171 = sphi 0, %s168
    %s172 = sphi 0, %s171
    %s188 = sphi 0, %s172
    %s198 = sphi 0, %s200
    %s201 = sphi 0, %s198
    %s202 = sphi 0, %s201
    %s218 = sphi 0, %s202
  $region4: #{unet_innermost_forward.3} parent=0 // loop_header_branch
    %15 = sbr.rel (%p13) target = $region8
  $region5: #{unet_innermost_forward.3} parent=0 // loop_body
    %s17 = ssub.s32 %s12, 1
    %s18 = ssub.s32 %s12, 2
    %s31 = sadd.s32 1, %s22
    %p32 = scmp.ge.s32.totalorder %s31, 1
    %s33 = scalar_select %p32, 0, %s31
    %s34 = sadd.s32 1, %s21
    %s35 = scalar_select %p32, %s34, %s21
    %p36 = scmp.ge.s32.totalorder %s35, 8
    %s37 = scalar_select %p36, 0, %s35
    %s38 = sadd.s32 1, %s20
    %s39 = scalar_select %p36, %s38, %s20
    %p40 = scmp.ge.s32.totalorder %s39, 1
    %s41 = scalar_select %p40, 0, %s39
    %s42 = sadd.s32 1, %s19
    %s43 = scalar_select %p40, %s42, %s19
    %p44 = scmp.ge.s32.totalorder %s43, 1
    %s45 = scalar_select %p44, 0, %s43
    %s46 = ssub.s32 %s21, %s37
    %s47 = ssub.s32 %s19, %s45
    %s48 = sor.u32 %s46, %s47
    %s49 = ssub.s32 %s22, %s33
    %s50 = sor.u32 %s48, %s49
    %p51 = scmp.eq.s32.totalorder %s50, 0
    %s53 = sadd.s32 %s52, 1
    %s54 = scalar_select %p51, %s52, %s53
    %p57 = pneg %p51
    %p58 = scmp.eq.s32.totalorder %s12, 7
    %p59 = por %p57, %p58
    %p60 = scmp.ne.s32.totalorder %s52, %s55
    %p61 = scmp.eq.s32.totalorder %s12, 0
    %p62 = por %p60, %p61
    %p63 = scmp.ne.s32.totalorder %s52, %s55
    %p64 = scmp.eq.s32.totalorder %s17, 7
    %p65 = por %p63, %p64
    %p66 = scmp.ne.s32.totalorder %s55, %s56
    %p67 = scmp.eq.s32.totalorder %s17, 0
    %p68 = por %p66, %p67
    %p69 = scmp.ne.s32.totalorder %s55, %s56
    %p70 = scmp.eq.s32.totalorder %s18, 7
    %p71 = por %p69, %p70
    %p73 = scmp.ne.s32.totalorder %s56, %s72
    %p74 = scmp.eq.s32.totalorder %s18, 0
    %p75 = por %p73, %p74
    %s76 = ssub.s32 %s21, %s37
    %s77 = ssub.s32 %s22, %s33
    %s78 = sor.u32 %s76, %s77
    %s79 = ssub.s32 %s20, %s41
    %s80 = sor.u32 %s78, %s79
    %p81 = scmp.eq.s32.totalorder %s80, 0
    %s83 = sadd.s32 %s82, 1
    %s84 = scalar_select %p81, %s82, %s83
    %p87 = pneg %p81
    %p88 = scmp.eq.s32.totalorder %s12, 7
    %p89 = por %p87, %p88
    %p90 = scmp.ne.s32.totalorder %s82, %s85
    %p91 = scmp.eq.s32.totalorder %s12, 0
    %p92 = por %p90, %p91
    %p93 = scmp.ne.s32.totalorder %s82, %s85
    %p94 = scmp.eq.s32.totalorder %s17, 7
    %p95 = por %p93, %p94
    %p96 = scmp.ne.s32.totalorder %s85, %s86
    %p97 = scmp.eq.s32.totalorder %s17, 0
    %p98 = por %p96, %p97
    %p99 = scmp.ne.s32.totalorder %s85, %s86
    %p100 = scmp.eq.s32.totalorder %s18, 7
    %p101 = por %p99, %p100
    %p103 = scmp.ne.s32.totalorder %s86, %s102
    %p104 = scmp.eq.s32.totalorder %s18, 0
    %p105 = por %p103, %p104
    %s106 = ssub.s32 %s20, %s41
    %p107 = scmp.eq.s32.totalorder %s106, 0
    %s109 = sadd.s32 %s108, 1
    %s110 = scalar_select %p107, %s108, %s109
    %p113 = pneg %p107
    %p114 = scmp.eq.s32.totalorder %s12, 7
    %p115 = por %p113, %p114
    %p116 = scmp.ne.s32.totalorder %s108, %s111
    %p117 = scmp.eq.s32.totalorder %s12, 0
    %p118 = por %p116, %p117
    %p119 = scmp.ne.s32.totalorder %s108, %s111
    %p120 = scmp.eq.s32.totalorder %s17, 7
    %p121 = por %p119, %p120
    %p122 = scmp.ne.s32.totalorder %s111, %s112
    %p123 = scmp.eq.s32.totalorder %s17, 0
    %p124 = por %p122, %p123
    %p125 = scmp.ne.s32.totalorder %s111, %s112
    %p126 = scmp.eq.s32.totalorder %s18, 7
    %p127 = por %p125, %p126
    %p129 = scmp.ne.s32.totalorder %s112, %s128
    %p130 = scmp.eq.s32.totalorder %s18, 0
    %p131 = por %p129, %p130
    %s132 = ssub.s32 %s21, %s37
    %s133 = ssub.s32 %s19, %s45
    %s134 = sor.u32 %s132, %s133
    %s135 = ssub.s32 %s20, %s41
    %s136 = sor.u32 %s134, %s135
    %p137 = scmp.eq.s32.totalorder %s136, 0
    %s139 = sadd.s32 %s138, 1
    %s140 = scalar_select %p137, %s138, %s139
    %p143 = pneg %p137
    %p144 = scmp.eq.s32.totalorder %s12, 7
    %p145 = por %p143, %p144
    %p146 = scmp.ne.s32.totalorder %s138, %s141
    %p147 = scmp.eq.s32.totalorder %s12, 0
    %p148 = por %p146, %p147
    %p149 = scmp.ne.s32.totalorder %s138, %s141
    %p150 = scmp.eq.s32.totalorder %s17, 7
    %p151 = por %p149, %p150
    %p152 = scmp.ne.s32.totalorder %s141, %s142
    %p153 = scmp.eq.s32.totalorder %s17, 0
    %p154 = por %p152, %p153
    %p155 = scmp.ne.s32.totalorder %s141, %s142
    %p156 = scmp.eq.s32.totalorder %s18, 7
    %p157 = por %p155, %p156
    %p159 = scmp.ne.s32.totalorder %s142, %s158
    %p160 = scmp.eq.s32.totalorder %s18, 0
    %p161 = por %p159, %p160
    %s162 = ssub.s32 %s21, %s37
    %s163 = ssub.s32 %s19, %s45
    %s164 = sor.u32 %s162, %s163
    %s165 = ssub.s32 %s20, %s41
    %s166 = sor.u32 %s164, %s165
    %p167 = scmp.eq.s32.totalorder %s166, 0
    %s169 = sadd.s32 %s168, 1
    %s170 = scalar_select %p167, %s168, %s169
    %p173 = pneg %p167
    %p174 = scmp.eq.s32.totalorder %s12, 7
    %p175 = por %p173, %p174
    %p176 = scmp.ne.s32.totalorder %s168, %s171
    %p177 = scmp.eq.s32.totalorder %s12, 0
    %p178 = por %p176, %p177
    %p179 = scmp.ne.s32.totalorder %s168, %s171
    %p180 = scmp.eq.s32.totalorder %s17, 7
    %p181 = por %p179, %p180
    %p182 = scmp.ne.s32.totalorder %s171, %s172
    %p183 = scmp.eq.s32.totalorder %s17, 0
    %p184 = por %p182, %p183
    %p185 = scmp.ne.s32.totalorder %s171, %s172
    %p186 = scmp.eq.s32.totalorder %s18, 7
    %p187 = por %p185, %p186
    %p189 = scmp.ne.s32.totalorder %s172, %s188
    %p190 = scmp.eq.s32.totalorder %s18, 0
    %p191 = por %p189, %p190
    %s192 = ssub.s32 %s21, %s37
    %s193 = ssub.s32 %s19, %s45
    %s194 = sor.u32 %s192, %s193
    %s195 = ssub.s32 %s20, %s41
    %s196 = sor.u32 %s194, %s195
    %p197 = scmp.eq.s32.totalorder %s196, 0
    %s199 = sadd.s32 %s198, 1
    %s200 = scalar_select %p197, %s198, %s199
    %p203 = pneg %p197
    %p204 = scmp.eq.s32.totalorder %s12, 7
    %p205 = por %p203, %p204
    %p206 = scmp.ne.s32.totalorder %s198, %s201
    %p207 = scmp.eq.s32.totalorder %s12, 0
    %p208 = por %p206, %p207
    %p209 = scmp.ne.s32.totalorder %s198, %s201
    %p210 = scmp.eq.s32.totalorder %s17, 7
    %p211 = por %p209, %p210
    %p212 = scmp.ne.s32.totalorder %s201, %s202
    %p213 = scmp.eq.s32.totalorder %s17, 0
    %p214 = por %p212, %p213
    %p215 = scmp.ne.s32.totalorder %s201, %s202
    %p216 = scmp.eq.s32.totalorder %s18, 7
    %p217 = por %p215, %p216
    %p219 = scmp.ne.s32.totalorder %s202, %s218
    %p220 = scmp.eq.s32.totalorder %s18, 0
    %p221 = por %p219, %p220
    %p222 = scmp.le.s32.totalorder 1, %s12
    %p223 = scmp.lt.s32.totalorder %s12, 9
    %p224 = pnand %p222, %p223
    %p225 = pneg %p224
    // Predicated region
    $region9: #{unet_innermost_forward.3} parent=5 // pred_check
      _
    $region10: #{unet_innermost_forward.3} parent=5 // pred_check_branch
      %227 = sbr.rel (%p224) target = $region12
    $region11: #{unet_innermost_forward.3} parent=5 // pred_region
      %s228 = ssub.s32 %s12, 1
      // Predicated region
      $region13: #{unet_innermost_forward.3} parent=11 // pred_check
        %p229 = pneg %p124
      $region14: #{unet_innermost_forward.3} parent=11 // pred_check_branch
        %231 = sbr.rel (%p229) target = $region16
      $region15: #{unet_innermost_forward.3} parent=11 // pred_region
        %p232 = scmp.lt.s32.totalorder %s24, 0
        %s233 = scalar_select %p232, %s24, 0
        %s234 = scalar_lea.vmem %s2, %s233
      $region16: #{unet_innermost_forward.3} parent=11 // pred_fallthru
        _
    $region12: #{unet_innermost_forward.3} parent=5 // pred_fallthru
      _
    %p235 = scmp.lt.s32.totalorder %s12, 8
    // Predicated region
    $region17: #{unet_innermost_forward.3} parent=5 // pred_check
      %p236 = pneg %p235
    $region18: #{unet_innermost_forward.3} parent=5 // pred_check_branch
      %238 = sbr.rel (%p236) target = $region20
    $region19: #{unet_innermost_forward.3} parent=5 // pred_region
      // Predicated region
      $region21: #{unet_innermost_forward.3} parent=19 // pred_check
        %p239 = pneg %p62
      $region22: #{unet_innermost_forward.3} parent=19 // pred_check_branch
        %241 = sbr.rel (%p239) target = $region24
      $region23: #{unet_innermost_forward.3} parent=19 // pred_region
        %s242 = smul.u32 16, %s19
        %s243 = smul.u32 8, %s22
        %p244 = scmp.lt.s32.totalorder %s21, 7
        %s245 = scalar_select %p244, %s21, 7
        %p246 = scmp.lt.s32.totalorder %s242, 15
        %s247 = scalar_select %p246, %s242, 15
        %p248 = scmp.lt.s32.totalorder %s243, 7
        %s249 = scalar_select %p248, %s243, 7
        %s250 = smul.addr %s247, 8
        %s251 = sadd.s32 %s249, %s250
        %s252 = smul.addr %s245, 128
        %s253 = sadd.s32 %s251, %s252
        %s254 = smul.addr %s253, 8
        %s255 = scalar_lea.vmem %s0, %s254
        %s256 = smul.u32 16, %s19
        %s257 = smul.u32 8, %s22
      $region24: #{unet_innermost_forward.3} parent=19 // pred_fallthru
        _
      // Predicated region
      $region25: #{unet_innermost_forward.3} parent=19 // pred_check
        %p258 = pneg %p92
      $region26: #{unet_innermost_forward.3} parent=19 // pred_check_branch
        %260 = sbr.rel (%p258) target = $region28
      $region27: #{unet_innermost_forward.3} parent=19 // pred_region
        %s261 = smul.u32 128, %s22
        %p262 = scmp.lt.s32.totalorder %s21, 7
        %s263 = scalar_select %p262, %s21, 7
        %p264 = scmp.lt.s32.totalorder %s261, 127
        %s265 = scalar_select %p264, %s261, 127
        %p266 = scmp.lt.s32.totalorder %s20, 0
        %s267 = scalar_select %p266, %s20, 0
        %s268 = sadd.s32 %s267, %s265
        %s269 = smul.addr %s263, 128
        %s270 = sadd.s32 %s268, %s269
        %s271 = smul.addr %s270, 8
        %s272 = scalar_lea.vmem %s1, %s271
        %s273 = smul.u32 128, %s22
      $region28: #{unet_innermost_forward.3} parent=19 // pred_fallthru
        _
    $region20: #{unet_innermost_forward.3} parent=5 // pred_fallthru
      _
    %p274 = scmp.le.s32.totalorder 1, %s12
    %p275 = scmp.lt.s32.totalorder %s12, 9
    %p276 = pnand %p274, %p275
    %p277 = pneg %p276
    // Predicated region
    $region29: #{unet_innermost_forward.3} parent=5 // pred_check
      _
    $region30: #{unet_innermost_forward.3} parent=5 // pred_check_branch
      %279 = sbr.rel (%p276) target = $region32
    $region31: #{unet_innermost_forward.3} parent=5 // pred_region
      %s280 = ssub.s32 %s12, 1
      %s281 = smul.u32 16, %s23
      %s282 = smul.u32 8, %s26
      %p283 = scmp.lt.s32.totalorder %s25, 7
      %s284 = scalar_select %p283, %s25, 7
      %p285 = scmp.lt.s32.totalorder %s281, 15
      %s286 = scalar_select %p285, %s281, 15
      %p287 = scmp.lt.s32.totalorder %s282, 7
      %s288 = scalar_select %p287, %s282, 7
      %s289 = smul.addr %s286, 8
      %s290 = sadd.s32 %s288, %s289
      %s291 = smul.addr %s284, 128
      %s292 = sadd.s32 %s290, %s291
      %s293 = smul.addr %s292, 8
      %s294 = scalar_lea.vmem %s0, %s293
      %p295 = pneg %p68
      %p296 = pneg %p65
      %s297 = smul.u32 128, %s26
      %p298 = scmp.lt.s32.totalorder %s25, 7
      %s299 = scalar_select %p298, %s25, 7
      %p300 = scmp.lt.s32.totalorder %s297, 127
      %s301 = scalar_select %p300, %s297, 127
      %p302 = scmp.lt.s32.totalorder %s24, 0
      %s303 = scalar_select %p302, %s24, 0
      %s304 = sadd.s32 %s303, %s301
      %s305 = smul.addr %s299, 128
      %s306 = sadd.s32 %s304, %s305
      %s307 = smul.addr %s306, 8
      %s308 = scalar_lea.vmem %s1, %s307
      %p309 = pneg %p98
      %p310 = pneg %p95
      %p311 = scmp.lt.s32.totalorder %s24, 0
      %s312 = scalar_select %p311, %s24, 0
      %s313 = scalar_lea.vmem %s2, %s312
      %p314 = pneg %p124
      %p315 = pneg %p121
      %p316 = pneg %p154
      %p317 = pneg %p151
      %s318 = smul.u32 16, %s23
      %p319 = scmp.lt.s32.totalorder %s25, 7
      %s320 = scalar_select %p319, %s25, 7
      %p321 = scmp.lt.s32.totalorder %s318, 15
      %s322 = scalar_select %p321, %s318, 15
      %p323 = scmp.lt.s32.totalorder %s24, 0
      %s324 = scalar_select %p323, %s24, 0
      %s325 = sadd.s32 %s324, %s322
      %s326 = smul.addr %s320, 16
      %s327 = sadd.s32 %s325, %s326
      %s328 = smul.addr %s327, 8
      %s329 = scalar_lea.vmem %s3, %s328
      %p330 = pneg %p184
      %p331 = pneg %p181
      %p332 = scmp.lt.s32.totalorder %s25, 7
      %s333 = scalar_select %p332, %s25, 7
      %p334 = scmp.lt.s32.totalorder %s23, 0
      %s335 = scalar_select %p334, %s23, 0
      %p336 = scmp.lt.s32.totalorder %s24, 0
      %s337 = scalar_select %p336, %s24, 0
      %s338 = sadd.s32 %s337, %s335
      %s339 = sadd.s32 %s338, %s333
      %s340 = scalar_lea.vmem %s4, %s339
      %p341 = pneg %p214
      %p342 = pneg %p211
      %p343 = scmp.lt.s32.totalorder %s25, 7
      %s344 = scalar_select %p343, %s25, 7
      %p345 = scmp.lt.s32.totalorder %s23, 0
      %s346 = scalar_select %p345, %s23, 0
      %p347 = scmp.lt.s32.totalorder %s24, 0
      %s348 = scalar_select %p347, %s24, 0
      %s349 = sadd.s32 %s348, %s346
      %s350 = sadd.s32 %s349, %s344
      %s351 = scalar_lea.vmem %s5, %s350
      %s352 = smul.u32 16, %s23
      %s353 = smul.u32 8, %s26
      %p354 = scmp.lt.s32.totalorder %s25, 7
      %s355 = scalar_select %p354, %s25, 7
      %p356 = scmp.lt.s32.totalorder %s352, 15
      %s357 = scalar_select %p356, %s352, 15
      %p358 = scmp.lt.s32.totalorder %s353, 7
      %s359 = scalar_select %p358, %s353, 7
      %s360 = smul.addr %s357, 8
      %s361 = sadd.s32 %s359, %s360
      %s362 = smul.addr %s355, 128
      %s363 = sadd.s32 %s361, %s362
      %s364 = smul.addr %s363, 8
      %s365 = scalar_lea.vmem %s0, %s364
      %s366 = smul.u32 16, %s23
      %s367 = smul.u32 8, %s26
      %s368 = smul.u32 128, %s26
      %p369 = scmp.lt.s32.totalorder %s25, 7
      %s370 = scalar_select %p369, %s25, 7
      %p371 = scmp.lt.s32.totalorder %s368, 127
      %s372 = scalar_select %p371, %s368, 127
      %p373 = scmp.lt.s32.totalorder %s24, 0
      %s374 = scalar_select %p373, %s24, 0
      %s375 = sadd.s32 %s374, %s372
      %s376 = smul.addr %s370, 128
      %s377 = sadd.s32 %s375, %s376
      %s378 = smul.addr %s377, 8
      %s379 = scalar_lea.vmem %s1, %s378
      %s380 = smul.u32 128, %s26
      %p381 = scmp.lt.s32.totalorder %s24, 0
      %s382 = scalar_select %p381, %s24, 0
      %s383 = scalar_lea.vmem %s2, %s382
      %s384 = smul.u32 16, %s23
      %p385 = scmp.lt.s32.totalorder %s25, 7
      %s386 = scalar_select %p385, %s25, 7
      %p387 = scmp.lt.s32.totalorder %s384, 15
      %s388 = scalar_select %p387, %s384, 15
      %p389 = scmp.lt.s32.totalorder %s24, 0
      %s390 = scalar_select %p389, %s24, 0
      %s391 = sadd.s32 %s390, %s388
      %s392 = smul.addr %s386, 16
      %s393 = sadd.s32 %s391, %s392
      %s394 = smul.addr %s393, 8
      %s395 = scalar_lea.vmem %s3, %s394
      %s396 = smul.u32 16, %s23
      %p397 = scmp.lt.s32.totalorder %s25, 7
      %s398 = scalar_select %p397, %s25, 7
      %p399 = scmp.lt.s32.totalorder %s23, 0
      %s400 = scalar_select %p399, %s23, 0
      %p401 = scmp.lt.s32.totalorder %s24, 0
      %s402 = scalar_select %p401, %s24, 0
      %s403 = sadd.s32 %s402, %s400
      %s404 = sadd.s32 %s403, %s398
      %s405 = scalar_lea.vmem %s4, %s404
      %p406 = scmp.lt.s32.totalorder %s25, 7
      %s407 = scalar_select %p406, %s25, 7
      %p408 = scmp.lt.s32.totalorder %s23, 0
      %s409 = scalar_select %p408, %s23, 0
      %p410 = scmp.lt.s32.totalorder %s24, 0
      %s411 = scalar_select %p410, %s24, 0
      %s412 = sadd.s32 %s411, %s409
      %s413 = sadd.s32 %s412, %s407
      %s414 = scalar_lea.vmem %s5, %s413
      %p415 = scmp.eq.s32.totalorder %s26, 0
      // Predicated region
      $region33: #{unet_innermost_forward.3} parent=31 // pred_check
        %p416 = pneg %p415
      $region34: #{unet_innermost_forward.3} parent=31 // pred_check_branch
        %418 = sbr.rel (%p416) target = $region36
      $region35: #{unet_innermost_forward.3} parent=31 // pred_region
        %419 = vst [vmem:[#allocation2] sm:$0xff] 0.0
        %420 = vst [vmem:[#allocation2 + $0x8] sm:$0xff] 0.0
        %421 = vst [vmem:[#allocation2 + $0x10] sm:$0xff] 0.0
        %422 = vst [vmem:[#allocation2 + $0x18] sm:$0xff] 0.0
        %423 = vst [vmem:[#allocation2 + $0x20] sm:$0xff] 0.0
        %424 = vst [vmem:[#allocation2 + $0x28] sm:$0xff] 0.0
        %425 = vst [vmem:[#allocation2 + $0x30] sm:$0xff] 0.0
        %426 = vst [vmem:[#allocation2 + $0x38] sm:$0xff] 0.0
        %427 = vst [vmem:[#allocation2 + $0x40] sm:$0xff] 0.0
        %428 = vst [vmem:[#allocation2 + $0x48] sm:$0xff] 0.0
        %429 = vst [vmem:[#allocation2 + $0x50] sm:$0xff] 0.0
        %430 = vst [vmem:[#allocation2 + $0x58] sm:$0xff] 0.0
        %431 = vst [vmem:[#allocation2 + $0x60] sm:$0xff] 0.0
        %432 = vst [vmem:[#allocation2 + $0x68] sm:$0xff] 0.0
        %433 = vst [vmem:[#allocation2 + $0x70] sm:$0xff] 0.0
        %434 = vst [vmem:[#allocation2 + $0x78] sm:$0xff] 0.0
      $region36: #{unet_innermost_forward.3} parent=31 // pred_fallthru
        _
      %v435 = vld [vmem:[%s365] sm:$0xff]
      %v436 = vld [vmem:[%s365 + $0x8] sm:$0xff]
      %v437 = vld [vmem:[%s365 + $0x10] sm:$0xff]
      %v438 = vld [vmem:[%s365 + $0x18] sm:$0xff]
      %v439 = vld [vmem:[%s365 + $0x20] sm:$0xff]
      %v440 = vld [vmem:[%s365 + $0x28] sm:$0xff]
      %v441 = vld [vmem:[%s365 + $0x30] sm:$0xff]
      %v442 = vld [vmem:[%s365 + $0x38] sm:$0xff]
      %v443 = vld [vmem:[%s365 + $0x40] sm:$0xff]
      %v444 = vld [vmem:[%s365 + $0x48] sm:$0xff]
      %v445 = vld [vmem:[%s365 + $0x50] sm:$0xff]
      %v446 = vld [vmem:[%s365 + $0x58] sm:$0xff]
      %v447 = vld [vmem:[%s365 + $0x60] sm:$0xff]
      %v448 = vld [vmem:[%s365 + $0x68] sm:$0xff]
      %v449 = vld [vmem:[%s365 + $0x70] sm:$0xff]
      %v450 = vld [vmem:[%s365 + $0x78] sm:$0xff]
      %v451 = vld [vmem:[%s365 + $0x80] sm:$0xff]
      %v452 = vld [vmem:[%s365 + $0x88] sm:$0xff]
      %v453 = vld [vmem:[%s365 + $0x90] sm:$0xff]
      %v454 = vld [vmem:[%s365 + $0x98] sm:$0xff]
      %v455 = vld [vmem:[%s365 + $0xa0] sm:$0xff]
      %v456 = vld [vmem:[%s365 + $0xa8] sm:$0xff]
      %v457 = vld [vmem:[%s365 + $0xb0] sm:$0xff]
      %v458 = vld [vmem:[%s365 + $0xb8] sm:$0xff]
      %v459 = vld [vmem:[%s365 + $0xc0] sm:$0xff]
      %v460 = vld [vmem:[%s365 + $0xc8] sm:$0xff]
      %v461 = vld [vmem:[%s365 + $0xd0] sm:$0xff]
      %v462 = vld [vmem:[%s365 + $0xd8] sm:$0xff]
      %v463 = vld [vmem:[%s365 + $0xe0] sm:$0xff]
      %v464 = vld [vmem:[%s365 + $0xe8] sm:$0xff]
      %v465 = vld [vmem:[%s365 + $0xf0] sm:$0xff]
      %v466 = vld [vmem:[%s365 + $0xf8] sm:$0xff]
      %v467 = vld [vmem:[%s365 + $0x100] sm:$0xff]
      %v468 = vld [vmem:[%s365 + $0x108] sm:$0xff]
      %v469 = vld [vmem:[%s365 + $0x110] sm:$0xff]
      %v470 = vld [vmem:[%s365 + $0x118] sm:$0xff]
      %v471 = vld [vmem:[%s365 + $0x120] sm:$0xff]
      %v472 = vld [vmem:[%s365 + $0x128] sm:$0xff]
      %v473 = vld [vmem:[%s365 + $0x130] sm:$0xff]
      %v474 = vld [vmem:[%s365 + $0x138] sm:$0xff]
      %v475 = vld [vmem:[%s365 + $0x140] sm:$0xff]
      %v476 = vld [vmem:[%s365 + $0x148] sm:$0xff]
      %v477 = vld [vmem:[%s365 + $0x150] sm:$0xff]
      %v478 = vld [vmem:[%s365 + $0x158] sm:$0xff]
      %v479 = vld [vmem:[%s365 + $0x160] sm:$0xff]
      %v480 = vld [vmem:[%s365 + $0x168] sm:$0xff]
      %v481 = vld [vmem:[%s365 + $0x170] sm:$0xff]
      %v482 = vld [vmem:[%s365 + $0x178] sm:$0xff]
      %v483 = vld [vmem:[%s365 + $0x180] sm:$0xff]
      %v484 = vld [vmem:[%s365 + $0x188] sm:$0xff]
      %v485 = vld [vmem:[%s365 + $0x190] sm:$0xff]
      %v486 = vld [vmem:[%s365 + $0x198] sm:$0xff]
      %v487 = vld [vmem:[%s365 + $0x1a0] sm:$0xff]
      %v488 = vld [vmem:[%s365 + $0x1a8] sm:$0xff]
      %v489 = vld [vmem:[%s365 + $0x1b0] sm:$0xff]
      %v490 = vld [vmem:[%s365 + $0x1b8] sm:$0xff]
      %v491 = vld [vmem:[%s365 + $0x1c0] sm:$0xff]
      %v492 = vld [vmem:[%s365 + $0x1c8] sm:$0xff]
      %v493 = vld [vmem:[%s365 + $0x1d0] sm:$0xff]
      %v494 = vld [vmem:[%s365 + $0x1d8] sm:$0xff]
      %v495 = vld [vmem:[%s365 + $0x1e0] sm:$0xff]
      %v496 = vld [vmem:[%s365 + $0x1e8] sm:$0xff]
      %v497 = vld [vmem:[%s365 + $0x1f0] sm:$0xff]
      %v498 = vld [vmem:[%s365 + $0x1f8] sm:$0xff]
      %v499 = vld [vmem:[%s365 + $0x200] sm:$0xff]
      %v500 = vld [vmem:[%s365 + $0x208] sm:$0xff]
      %v501 = vld [vmem:[%s365 + $0x210] sm:$0xff]
      %v502 = vld [vmem:[%s365 + $0x218] sm:$0xff]
      %v503 = vld [vmem:[%s365 + $0x220] sm:$0xff]
      %v504 = vld [vmem:[%s365 + $0x228] sm:$0xff]
      %v505 = vld [vmem:[%s365 + $0x230] sm:$0xff]
      %v506 = vld [vmem:[%s365 + $0x238] sm:$0xff]
      %v507 = vld [vmem:[%s365 + $0x240] sm:$0xff]
      %v508 = vld [vmem:[%s365 + $0x248] sm:$0xff]
      %v509 = vld [vmem:[%s365 + $0x250] sm:$0xff]
      %v510 = vld [vmem:[%s365 + $0x258] sm:$0xff]
      %v511 = vld [vmem:[%s365 + $0x260] sm:$0xff]
      %v512 = vld [vmem:[%s365 + $0x268] sm:$0xff]
      %v513 = vld [vmem:[%s365 + $0x270] sm:$0xff]
      %v514 = vld [vmem:[%s365 + $0x278] sm:$0xff]
      %v515 = vld [vmem:[%s365 + $0x280] sm:$0xff]
      %v516 = vld [vmem:[%s365 + $0x288] sm:$0xff]
      %v517 = vld [vmem:[%s365 + $0x290] sm:$0xff]
      %v518 = vld [vmem:[%s365 + $0x298] sm:$0xff]
      %v519 = vld [vmem:[%s365 + $0x2a0] sm:$0xff]
      %v520 = vld [vmem:[%s365 + $0x2a8] sm:$0xff]
      %v521 = vld [vmem:[%s365 + $0x2b0] sm:$0xff]
      %v522 = vld [vmem:[%s365 + $0x2b8] sm:$0xff]
      %v523 = vld [vmem:[%s365 + $0x2c0] sm:$0xff]
      %v524 = vld [vmem:[%s365 + $0x2c8] sm:$0xff]
      %v525 = vld [vmem:[%s365 + $0x2d0] sm:$0xff]
      %v526 = vld [vmem:[%s365 + $0x2d8] sm:$0xff]
      %v527 = vld [vmem:[%s365 + $0x2e0] sm:$0xff]
      %v528 = vld [vmem:[%s365 + $0x2e8] sm:$0xff]
      %v529 = vld [vmem:[%s365 + $0x2f0] sm:$0xff]
      %v530 = vld [vmem:[%s365 + $0x2f8] sm:$0xff]
      %v531 = vld [vmem:[%s365 + $0x300] sm:$0xff]
      %v532 = vld [vmem:[%s365 + $0x308] sm:$0xff]
      %v533 = vld [vmem:[%s365 + $0x310] sm:$0xff]
      %v534 = vld [vmem:[%s365 + $0x318] sm:$0xff]
      %v535 = vld [vmem:[%s365 + $0x320] sm:$0xff]
      %v536 = vld [vmem:[%s365 + $0x328] sm:$0xff]
      %v537 = vld [vmem:[%s365 + $0x330] sm:$0xff]
      %v538 = vld [vmem:[%s365 + $0x338] sm:$0xff]
      %v539 = vld [vmem:[%s365 + $0x340] sm:$0xff]
      %v540 = vld [vmem:[%s365 + $0x348] sm:$0xff]
      %v541 = vld [vmem:[%s365 + $0x350] sm:$0xff]
      %v542 = vld [vmem:[%s365 + $0x358] sm:$0xff]
      %v543 = vld [vmem:[%s365 + $0x360] sm:$0xff]
      %v544 = vld [vmem:[%s365 + $0x368] sm:$0xff]
      %v545 = vld [vmem:[%s365 + $0x370] sm:$0xff]
      %v546 = vld [vmem:[%s365 + $0x378] sm:$0xff]
      %v547 = vld [vmem:[%s365 + $0x380] sm:$0xff]
      %v548 = vld [vmem:[%s365 + $0x388] sm:$0xff]
      %v549 = vld [vmem:[%s365 + $0x390] sm:$0xff]
      %v550 = vld [vmem:[%s365 + $0x398] sm:$0xff]
      %v551 = vld [vmem:[%s365 + $0x3a0] sm:$0xff]
      %v552 = vld [vmem:[%s365 + $0x3a8] sm:$0xff]
      %v553 = vld [vmem:[%s365 + $0x3b0] sm:$0xff]
      %v554 = vld [vmem:[%s365 + $0x3b8] sm:$0xff]
      %v555 = vld [vmem:[%s365 + $0x3c0] sm:$0xff]
      %v556 = vld [vmem:[%s365 + $0x3c8] sm:$0xff]
      %v557 = vld [vmem:[%s365 + $0x3d0] sm:$0xff]
      %v558 = vld [vmem:[%s365 + $0x3d8] sm:$0xff]
      %v559 = vld [vmem:[%s365 + $0x3e0] sm:$0xff]
      %v560 = vld [vmem:[%s365 + $0x3e8] sm:$0xff]
      %v561 = vld [vmem:[%s365 + $0x3f0] sm:$0xff]
      %v562 = vld [vmem:[%s365 + $0x3f8] sm:$0xff]
      %v563 = vld [vmem:[#allocation2] sm:$0xff]
      %v564 = vld [vmem:[#allocation2 + $0x8] sm:$0xff]
      %v565 = vld [vmem:[#allocation2 + $0x10] sm:$0xff]
      %v566 = vld [vmem:[#allocation2 + $0x18] sm:$0xff]
      %v567 = vld [vmem:[#allocation2 + $0x20] sm:$0xff]
      %v568 = vld [vmem:[#allocation2 + $0x28] sm:$0xff]
      %v569 = vld [vmem:[#allocation2 + $0x30] sm:$0xff]
      %v570 = vld [vmem:[#allocation2 + $0x38] sm:$0xff]
      %v571 = vld [vmem:[#allocation2 + $0x40] sm:$0xff]
      %v572 = vld [vmem:[#allocation2 + $0x48] sm:$0xff]
      %v573 = vld [vmem:[#allocation2 + $0x50] sm:$0xff]
      %v574 = vld [vmem:[#allocation2 + $0x58] sm:$0xff]
      %v575 = vld [vmem:[#allocation2 + $0x60] sm:$0xff]
      %v576 = vld [vmem:[#allocation2 + $0x68] sm:$0xff]
      %v577 = vld [vmem:[#allocation2 + $0x70] sm:$0xff]
      %v578 = vld [vmem:[#allocation2 + $0x78] sm:$0xff]
      %v579 = vld [vmem:[%s379] sm:$0xff]
      %v580 = vld [vmem:[%s379 + $0x8] sm:$0xff]
      %v581 = vld [vmem:[%s379 + $0x10] sm:$0xff]
      %v582 = vld [vmem:[%s379 + $0x18] sm:$0xff]
      %v583 = vld [vmem:[%s379 + $0x20] sm:$0xff]
      %v584 = vld [vmem:[%s379 + $0x28] sm:$0xff]
      %v585 = vld [vmem:[%s379 + $0x30] sm:$0xff]
      %v586 = vld [vmem:[%s379 + $0x38] sm:$0xff]
      %v587 = vld [vmem:[%s379 + $0x40] sm:$0xff]
      %v588 = vld [vmem:[%s379 + $0x48] sm:$0xff]
      %v589 = vld [vmem:[%s379 + $0x50] sm:$0xff]
      %v590 = vld [vmem:[%s379 + $0x58] sm:$0xff]
      %v591 = vld [vmem:[%s379 + $0x60] sm:$0xff]
      %v592 = vld [vmem:[%s379 + $0x68] sm:$0xff]
      %v593 = vld [vmem:[%s379 + $0x70] sm:$0xff]
      %v594 = vld [vmem:[%s379 + $0x78] sm:$0xff]
      %v595 = vld [vmem:[%s379 + $0x80] sm:$0xff]
      %v596 = vld [vmem:[%s379 + $0x88] sm:$0xff]
      %v597 = vld [vmem:[%s379 + $0x90] sm:$0xff]
      %v598 = vld [vmem:[%s379 + $0x98] sm:$0xff]
      %v599 = vld [vmem:[%s379 + $0xa0] sm:$0xff]
      %v600 = vld [vmem:[%s379 + $0xa8] sm:$0xff]
      %v601 = vld [vmem:[%s379 + $0xb0] sm:$0xff]
      %v602 = vld [vmem:[%s379 + $0xb8] sm:$0xff]
      %v603 = vld [vmem:[%s379 + $0xc0] sm:$0xff]
      %v604 = vld [vmem:[%s379 + $0xc8] sm:$0xff]
      %v605 = vld [vmem:[%s379 + $0xd0] sm:$0xff]
      %v606 = vld [vmem:[%s379 + $0xd8] sm:$0xff]
      %v607 = vld [vmem:[%s379 + $0xe0] sm:$0xff]
      %v608 = vld [vmem:[%s379 + $0xe8] sm:$0xff]
      %v609 = vld [vmem:[%s379 + $0xf0] sm:$0xff]
      %v610 = vld [vmem:[%s379 + $0xf8] sm:$0xff]
      %v611 = vld [vmem:[%s379 + $0x100] sm:$0xff]
      %v612 = vld [vmem:[%s379 + $0x108] sm:$0xff]
      %v613 = vld [vmem:[%s379 + $0x110] sm:$0xff]
      %v614 = vld [vmem:[%s379 + $0x118] sm:$0xff]
      %v615 = vld [vmem:[%s379 + $0x120] sm:$0xff]
      %v616 = vld [vmem:[%s379 + $0x128] sm:$0xff]
      %v617 = vld [vmem:[%s379 + $0x130] sm:$0xff]
      %v618 = vld [vmem:[%s379 + $0x138] sm:$0xff]
      %v619 = vld [vmem:[%s379 + $0x140] sm:$0xff]
      %v620 = vld [vmem:[%s379 + $0x148] sm:$0xff]
      %v621 = vld [vmem:[%s379 + $0x150] sm:$0xff]
      %v622 = vld [vmem:[%s379 + $0x158] sm:$0xff]
      %v623 = vld [vmem:[%s379 + $0x160] sm:$0xff]
      %v624 = vld [vmem:[%s379 + $0x168] sm:$0xff]
      %v625 = vld [vmem:[%s379 + $0x170] sm:$0xff]
      %v626 = vld [vmem:[%s379 + $0x178] sm:$0xff]
      %v627 = vld [vmem:[%s379 + $0x180] sm:$0xff]
      %v628 = vld [vmem:[%s379 + $0x188] sm:$0xff]
      %v629 = vld [vmem:[%s379 + $0x190] sm:$0xff]
      %v630 = vld [vmem:[%s379 + $0x198] sm:$0xff]
      %v631 = vld [vmem:[%s379 + $0x1a0] sm:$0xff]
      %v632 = vld [vmem:[%s379 + $0x1a8] sm:$0xff]
      %v633 = vld [vmem:[%s379 + $0x1b0] sm:$0xff]
      %v634 = vld [vmem:[%s379 + $0x1b8] sm:$0xff]
      %v635 = vld [vmem:[%s379 + $0x1c0] sm:$0xff]
      %v636 = vld [vmem:[%s379 + $0x1c8] sm:$0xff]
      %v637 = vld [vmem:[%s379 + $0x1d0] sm:$0xff]
      %v638 = vld [vmem:[%s379 + $0x1d8] sm:$0xff]
      %v639 = vld [vmem:[%s379 + $0x1e0] sm:$0xff]
      %v640 = vld [vmem:[%s379 + $0x1e8] sm:$0xff]
      %v641 = vld [vmem:[%s379 + $0x1f0] sm:$0xff]
      %v642 = vld [vmem:[%s379 + $0x1f8] sm:$0xff]
      %v643 = vld [vmem:[%s379 + $0x200] sm:$0xff]
      %v644 = vld [vmem:[%s379 + $0x208] sm:$0xff]
      %v645 = vld [vmem:[%s379 + $0x210] sm:$0xff]
      %v646 = vld [vmem:[%s379 + $0x218] sm:$0xff]
      %v647 = vld [vmem:[%s379 + $0x220] sm:$0xff]
      %v648 = vld [vmem:[%s379 + $0x228] sm:$0xff]
      %v649 = vld [vmem:[%s379 + $0x230] sm:$0xff]
      %v650 = vld [vmem:[%s379 + $0x238] sm:$0xff]
      %v651 = vld [vmem:[%s379 + $0x240] sm:$0xff]
      %v652 = vld [vmem:[%s379 + $0x248] sm:$0xff]
      %v653 = vld [vmem:[%s379 + $0x250] sm:$0xff]
      %v654 = vld [vmem:[%s379 + $0x258] sm:$0xff]
      %v655 = vld [vmem:[%s379 + $0x260] sm:$0xff]
      %v656 = vld [vmem:[%s379 + $0x268] sm:$0xff]
      %v657 = vld [vmem:[%s379 + $0x270] sm:$0xff]
      %v658 = vld [vmem:[%s379 + $0x278] sm:$0xff]
      %v659 = vld [vmem:[%s379 + $0x280] sm:$0xff]
      %v660 = vld [vmem:[%s379 + $0x288] sm:$0xff]
      %v661 = vld [vmem:[%s379 + $0x290] sm:$0xff]
      %v662 = vld [vmem:[%s379 + $0x298] sm:$0xff]
      %v663 = vld [vmem:[%s379 + $0x2a0] sm:$0xff]
      %v664 = vld [vmem:[%s379 + $0x2a8] sm:$0xff]
      %v665 = vld [vmem:[%s379 + $0x2b0] sm:$0xff]
      %v666 = vld [vmem:[%s379 + $0x2b8] sm:$0xff]
      %v667 = vld [vmem:[%s379 + $0x2c0] sm:$0xff]
      %v668 = vld [vmem:[%s379 + $0x2c8] sm:$0xff]
      %v669 = vld [vmem:[%s379 + $0x2d0] sm:$0xff]
      %v670 = vld [vmem:[%s379 + $0x2d8] sm:$0xff]
      %v671 = vld [vmem:[%s379 + $0x2e0] sm:$0xff]
      %v672 = vld [vmem:[%s379 + $0x2e8] sm:$0xff]
      %v673 = vld [vmem:[%s379 + $0x2f0] sm:$0xff]
      %v674 = vld [vmem:[%s379 + $0x2f8] sm:$0xff]
      %v675 = vld [vmem:[%s379 + $0x300] sm:$0xff]
      %v676 = vld [vmem:[%s379 + $0x308] sm:$0xff]
      %v677 = vld [vmem:[%s379 + $0x310] sm:$0xff]
      %v678 = vld [vmem:[%s379 + $0x318] sm:$0xff]
      %v679 = vld [vmem:[%s379 + $0x320] sm:$0xff]
      %v680 = vld [vmem:[%s379 + $0x328] sm:$0xff]
      %v681 = vld [vmem:[%s379 + $0x330] sm:$0xff]
      %v682 = vld [vmem:[%s379 + $0x338] sm:$0xff]
      %v683 = vld [vmem:[%s379 + $0x340] sm:$0xff]
      %v684 = vld [vmem:[%s379 + $0x348] sm:$0xff]
      %v685 = vld [vmem:[%s379 + $0x350] sm:$0xff]
      %v686 = vld [vmem:[%s379 + $0x358] sm:$0xff]
      %v687 = vld [vmem:[%s379 + $0x360] sm:$0xff]
      %v688 = vld [vmem:[%s379 + $0x368] sm:$0xff]
      %v689 = vld [vmem:[%s379 + $0x370] sm:$0xff]
      %v690 = vld [vmem:[%s379 + $0x378] sm:$0xff]
      %v691 = vld [vmem:[%s379 + $0x380] sm:$0xff]
      %v692 = vld [vmem:[%s379 + $0x388] sm:$0xff]
      %v693 = vld [vmem:[%s379 + $0x390] sm:$0xff]
      %v694 = vld [vmem:[%s379 + $0x398] sm:$0xff]
      %v695 = vld [vmem:[%s379 + $0x3a0] sm:$0xff]
      %v696 = vld [vmem:[%s379 + $0x3a8] sm:$0xff]
      %v697 = vld [vmem:[%s379 + $0x3b0] sm:$0xff]
      %v698 = vld [vmem:[%s379 + $0x3b8] sm:$0xff]
      %v699 = vld [vmem:[%s379 + $0x3c0] sm:$0xff]
      %v700 = vld [vmem:[%s379 + $0x3c8] sm:$0xff]
      %v701 = vld [vmem:[%s379 + $0x3d0] sm:$0xff]
      %v702 = vld [vmem:[%s379 + $0x3d8] sm:$0xff]
      %v703 = vld [vmem:[%s379 + $0x3e0] sm:$0xff]
      %v704 = vld [vmem:[%s379 + $0x3e8] sm:$0xff]
      %v705 = vld [vmem:[%s379 + $0x3f0] sm:$0xff]
      %v706 = vld [vmem:[%s379 + $0x3f8] sm:$0xff]
      %707 = vmatprep.subr.mxu0 0.0
      %708 = vmatpush1.msra.mxu0 %v579
      %709 = vmatprep.subr.mxu0 0.0
      %710 = vmatpush1.msra.mxu0 %v580
      %711 = vmatprep.subr.mxu0 0.0
      %712 = vmatpush1.msra.mxu0 %v581
      %713 = vmatprep.subr.mxu0 0.0
      %714 = vmatpush1.msra.mxu0 %v582
      %715 = vmatprep.subr.mxu0 0.0
      %716 = vmatpush1.msra.mxu0 %v583
      %717 = vmatprep.subr.mxu0 0.0
      %718 = vmatpush1.msra.mxu0 %v584
      %719 = vmatprep.subr.mxu0 0.0
      %720 = vmatpush1.msra.mxu0 %v585
      %721 = vmatprep.subr.mxu0 0.0
      %722 = vmatpush1.msra.mxu0 %v586
      %723 = vmatprep.subr.mxu0 0.0
      %724 = vmatpush1.msra.mxu0 %v587
      %725 = vmatprep.subr.mxu0 0.0
      %726 = vmatpush1.msra.mxu0 %v588
      %727 = vmatprep.subr.mxu0 0.0
      %728 = vmatpush1.msra.mxu0 %v589
      %729 = vmatprep.subr.mxu0 0.0
      %730 = vmatpush1.msra.mxu0 %v590
      %731 = vmatprep.subr.mxu0 0.0
      %732 = vmatpush1.msra.mxu0 %v591
      %733 = vmatprep.subr.mxu0 0.0
      %734 = vmatpush1.msra.mxu0 %v592
      %735 = vmatprep.subr.mxu0 0.0
      %736 = vmatpush1.msra.mxu0 %v593
      %737 = vmatprep.subr.mxu0 0.0
      %738 = vmatpush1.msra.mxu0 %v594
      %739 = vmatprep.subr.mxu0 0.0
      %740 = vmatpush1.msra.mxu0 %v595
      %741 = vmatprep.subr.mxu0 0.0
      %742 = vmatpush1.msra.mxu0 %v596
      %743 = vmatprep.subr.mxu0 0.0
      %744 = vmatpush1.msra.mxu0 %v597
      %745 = vmatprep.subr.mxu0 0.0
      %746 = vmatpush1.msra.mxu0 %v598
      %747 = vmatprep.subr.mxu0 0.0
      %748 = vmatpush1.msra.mxu0 %v599
      %749 = vmatprep.subr.mxu0 0.0
      %750 = vmatpush1.msra.mxu0 %v600
      %751 = vmatprep.subr.mxu0 0.0
      %752 = vmatpush1.msra.mxu0 %v601
      %753 = vmatprep.subr.mxu0 0.0
      %754 = vmatpush1.msra.mxu0 %v602
      %755 = vmatprep.subr.mxu0 0.0
      %756 = vmatpush1.msra.mxu0 %v603
      %757 = vmatprep.subr.mxu0 0.0
      %758 = vmatpush1.msra.mxu0 %v604
      %759 = vmatprep.subr.mxu0 0.0
      %760 = vmatpush1.msra.mxu0 %v605
      %761 = vmatprep.subr.mxu0 0.0
      %762 = vmatpush1.msra.mxu0 %v606
      %763 = vmatprep.subr.mxu0 0.0
      %764 = vmatpush1.msra.mxu0 %v607
      %765 = vmatprep.subr.mxu0 0.0
      %766 = vmatpush1.msra.mxu0 %v608
      %767 = vmatprep.subr.mxu0 0.0
      %768 = vmatpush1.msra.mxu0 %v609
      %769 = vmatprep.subr.mxu0 0.0
      %770 = vmatpush1.msra.mxu0 %v610
      %771 = vmatprep.mubr.f32.mxu0 %v436
      %772 = vmatmul.mubr.f32.gmra.mrb[0].mxu0 %v435
      %v773 = vpop.f32.mrb[0].mxu0
      %v774 = vadd.f32 0.0, %v773
      %v775 = vpop.f32.mrb[0].mxu0
      %776 = vmatprep.mubr.f32.mxu0 %v444
      %777 = vmatmul.mubr.f32.gmra.mrb[0].mxu0 %v443
      %v778 = vpop.f32.mrb[0].mxu0
      %v779 = vadd.f32 0.0, %v778
      %v780 = vpop.f32.mrb[0].mxu0
      %781 = vmatprep.mubr.f32.mxu0 %v452
      %782 = vmatmul.mubr.f32.gmra.mrb[0].mxu0 %v451
      %v783 = vpop.f32.mrb[0].mxu0
      %v784 = vadd.f32 0.0, %v783
      %v785 = vpop.f32.mrb[0].mxu0
      %786 = vmatprep.mubr.f32.mxu0 %v460
      %787 = vmatmul.mubr.f32.gmra.mrb[0].mxu0 %v459
      %v788 = vpop.f32.mrb[0].mxu0
      %v789 = vadd.f32 0.0, %v788
      %v790 = vpop.f32.mrb[0].mxu0
      %791 = vmatprep.mubr.f32.mxu0 %v468
      %792 = vmatmul.mubr.f32.gmra.mrb[0].mxu0 %v467
      %v793 = vpop.f32.mrb[0].mxu0
      %v794 = vadd.f32 0.0, %v793
      %v795 = vpop.f32.mrb[0].mxu0
      %796 = vmatprep.mubr.f32.mxu0 %v476
      %797 = vmatmul.mubr.f32.gmra.mrb[0].mxu0 %v475
      %v798 = vpop.f32.mrb[0].mxu0
      %v799 = vadd.f32 0.0, %v798
      %v800 = vpop.f32.mrb[0].mxu0
      %801 = vmatprep.mubr.f32.mxu0 %v484
      %802 = vmatmul.mubr.f32.gmra.mrb[0].mxu0 %v483
      %v803 = vpop.f32.mrb[0].mxu0
      %v804 = vadd.f32 0.0, %v803
      %v805 = vpop.f32.mrb[0].mxu0
      %806 = vmatprep.mubr.f32.mxu0 %v492
      %807 = vmatmul.mubr.f32.gmra.mrb[0].mxu0 %v491
      %v808 = vpop.f32.mrb[0].mxu0
      %v809 = vadd.f32 0.0, %v808
      %v810 = vpop.f32.mrb[0].mxu0
      %811 = vmatprep.mubr.f32.mxu0 %v500
      %812 = vmatmul.mubr.f32.gmra.mrb[0].mxu0 %v499
      %v813 = vpop.f32.mrb[0].mxu0
      %v814 = vadd.f32 0.0, %v813
      %v815 = vpop.f32.mrb[0].mxu0
      %816 = vmatprep.mubr.f32.mxu0 %v508
      %817 = vmatmul.mubr.f32.gmra.mrb[0].mxu0 %v507
      %v818 = vpop.f32.mrb[0].mxu0
      %v819 = vadd.f32 0.0, %v818
      %v820 = vpop.f32.mrb[0].mxu0
      %821 = vmatprep.mubr.f32.mxu0 %v516
      %822 = vmatmul.mubr.f32.gmra.mrb[0].mxu0 %v515
      %v823 = vpop.f32.mrb[0].mxu0
      %v824 = vadd.f32 0.0, %v823
      %v825 = vpop.f32.mrb[0].mxu0
      %826 = vmatprep.mubr.f32.mxu0 %v524
      %827 = vmatmul.mubr.f32.gmra.mrb[0].mxu0 %v523
      %v828 = vpop.f32.mrb[0].mxu0
      %v829 = vadd.f32 0.0, %v828
      %v830 = vpop.f32.mrb[0].mxu0
      %831 = vmatprep.mubr.f32.mxu0 %v532
      %832 = vmatmul.mubr.f32.gmra.mrb[0].mxu0 %v531
      %v833 = vpop.f32.mrb[0].mxu0
      %v834 = vadd.f32 0.0, %v833
      %v835 = vpop.f32.mrb[0].mxu0
      %836 = vmatprep.mubr.f32.mxu0 %v540
      %837 = vmatmul.mubr.f32.gmra.mrb[0].mxu0 %v539
      %v838 = vpop.f32.mrb[0].mxu0
      %v839 = vadd.f32 0.0, %v838
      %v840 = vpop.f32.mrb[0].mxu0
      %841 = vmatprep.mubr.f32.mxu0 %v548
      %842 = vmatmul.mubr.f32.gmra.mrb[0].mxu0 %v547
      %v843 = vpop.f32.mrb[0].mxu0
      %v844 = vadd.f32 0.0, %v843
      %v845 = vpop.f32.mrb[0].mxu0
      %846 = vmatprep.mubr.f32.mxu0 %v556
      %847 = vmatmul.mubr.f32.gmra.mrb[0].mxu0 %v555
      %v848 = vpop.f32.mrb[0].mxu0
      %v849 = vadd.f32 0.0, %v848
      %v850 = vpop.f32.mrb[0].mxu0
      %851 = vdwg.mxu0
      %852 = vmatprep.subr.mxu0 0.0
      %853 = vmatpush1.msra.mxu0 %v611
      %854 = vmatprep.subr.mxu0 0.0
      %855 = vmatpush1.msra.mxu0 %v612
      %856 = vmatprep.subr.mxu0 0.0
      %857 = vmatpush1.msra.mxu0 %v613
      %858 = vmatprep.subr.mxu0 0.0
      %859 = vmatpush1.msra.mxu0 %v614
      %860 = vmatprep.subr.mxu0 0.0
      %861 = vmatpush1.msra.mxu0 %v615
      %862 = vmatprep.subr.mxu0 0.0
      %863 = vmatpush1.msra.mxu0 %v616
      %864 = vmatprep.subr.mxu0 0.0
      %865 = vmatpush1.msra.mxu0 %v617
      %866 = vmatprep.subr.mxu0 0.0
      %867 = vmatpush1.msra.mxu0 %v618
      %868 = vmatprep.subr.mxu0 0.0
      %869 = vmatpush1.msra.mxu0 %v619
      %870 = vmatprep.subr.mxu0 0.0
      %871 = vmatpush1.msra.mxu0 %v620
      %872 = vmatprep.subr.mxu0 0.0
      %873 = vmatpush1.msra.mxu0 %v621
      %874 = vmatprep.subr.mxu0 0.0
      %875 = vmatpush1.msra.mxu0 %v622
      %876 = vmatprep.subr.mxu0 0.0
      %877 = vmatpush1.msra.mxu0 %v623
      %878 = vmatprep.subr.mxu0 0.0
      %879 = vmatpush1.msra.mxu0 %v624
      %880 = vmatprep.subr.mxu0 0.0
      %881 = vmatpush1.msra.mxu0 %v625
      %882 = vmatprep.subr.mxu0 0.0
      %883 = vmatpush1.msra.mxu0 %v626
      %884 = vmatprep.subr.mxu0 0.0
      %885 = vmatpush1.msra.mxu0 %v627
      %886 = vmatprep.subr.mxu0 0.0
      %887 = vmatpush1.msra.mxu0 %v628
      %888 = vmatprep.subr.mxu0 0.0
      %889 = vmatpush1.msra.mxu0 %v629
      %890 = vmatprep.subr.mxu0 0.0
      %891 = vmatpush1.msra.mxu0 %v630
      %892 = vmatprep.subr.mxu0 0.0
      %893 = vmatpush1.msra.mxu0 %v631
      %894 = vmatprep.subr.mxu0 0.0
      %895 = vmatpush1.msra.mxu0 %v632
      %896 = vmatprep.subr.mxu0 0.0
      %897 = vmatpush1.msra.mxu0 %v633
      %898 = vmatprep.subr.mxu0 0.0
      %899 = vmatpush1.msra.mxu0 %v634
      %900 = vmatprep.subr.mxu0 0.0
      %901 = vmatpush1.msra.mxu0 %v635
      %902 = vmatprep.subr.mxu0 0.0
      %903 = vmatpush1.msra.mxu0 %v636
      %904 = vmatprep.subr.mxu0 0.0
      %905 = vmatpush1.msra.mxu0 %v637
      %906 = vmatprep.subr.mxu0 0.0
      %907 = vmatpush1.msra.mxu0 %v638
      %908 = vmatprep.subr.mxu0 0.0
      %909 = vmatpush1.msra.mxu0 %v639
      %910 = vmatprep.subr.mxu0 0.0
      %911 = vmatpush1.msra.mxu0 %v640
      %912 = vmatprep.subr.mxu0 0.0
      %913 = vmatpush1.msra.mxu0 %v641
      %914 = vmatprep.subr.mxu0 0.0
      %915 = vmatpush1.msra.mxu0 %v642
      %916 = vmatprep.mubr.f32.mxu0 %v438
      %917 = vmatmul.mubr.f32.gmra.mrb[0].mxu0 %v437
      %v918 = vpop.f32.mrb[0].mxu0
      %v919 = vadd.f32 %v774, %v918
      %v920 = vpop.f32.mrb[0].mxu0
      %921 = vmatprep.mubr.f32.mxu0 %v446
      %922 = vmatmul.mubr.f32.gmra.mrb[0].mxu0 %v445
      %v923 = vpop.f32.mrb[0].mxu0
      %v924 = vadd.f32 %v779, %v923
      %v925 = vpop.f32.mrb[0].mxu0
      %926 = vmatprep.mubr.f32.mxu0 %v454
      %927 = vmatmul.mubr.f32.gmra.mrb[0].mxu0 %v453
      %v928 = vpop.f32.mrb[0].mxu0
      %v929 = vadd.f32 %v784, %v928
      %v930 = vpop.f32.mrb[0].mxu0
      %931 = vmatprep.mubr.f32.mxu0 %v462
      %932 = vmatmul.mubr.f32.gmra.mrb[0].mxu0 %v461
      %v933 = vpop.f32.mrb[0].mxu0
      %v934 = vadd.f32 %v789, %v933
      %v935 = vpop.f32.mrb[0].mxu0
      %936 = vmatprep.mubr.f32.mxu0 %v470
      %937 = vmatmul.mubr.f32.gmra.mrb[0].mxu0 %v469
      %v938 = vpop.f32.mrb[0].mxu0
      %v939 = vadd.f32 %v794, %v938
      %v940 = vpop.f32.mrb[0].mxu0
      %941 = vmatprep.mubr.f32.mxu0 %v478
      %942 = vmatmul.mubr.f32.gmra.mrb[0].mxu0 %v477
      %v943 = vpop.f32.mrb[0].mxu0
      %v944 = vadd.f32 %v799, %v943
      %v945 = vpop.f32.mrb[0].mxu0
      %946 = vmatprep.mubr.f32.mxu0 %v486
      %947 = vmatmul.mubr.f32.gmra.mrb[0].mxu0 %v485
      %v948 = vpop.f32.mrb[0].mxu0
      %v949 = vadd.f32 %v804, %v948
      %v950 = vpop.f32.mrb[0].mxu0
      %951 = vmatprep.mubr.f32.mxu0 %v494
      %952 = vmatmul.mubr.f32.gmra.mrb[0].mxu0 %v493
      %v953 = vpop.f32.mrb[0].mxu0
      %v954 = vadd.f32 %v809, %v953
      %v955 = vpop.f32.mrb[0].mxu0
      %956 = vmatprep.mubr.f32.mxu0 %v502
      %957 = vmatmul.mubr.f32.gmra.mrb[0].mxu0 %v501
      %v958 = vpop.f32.mrb[0].mxu0
      %v959 = vadd.f32 %v814, %v958
      %v960 = vpop.f32.mrb[0].mxu0
      %961 = vmatprep.mubr.f32.mxu0 %v510
      %962 = vmatmul.mubr.f32.gmra.mrb[0].mxu0 %v509
      %v963 = vpop.f32.mrb[0].mxu0
      %v964 = vadd.f32 %v819, %v963
      %v965 = vpop.f32.mrb[0].mxu0
      %966 = vmatprep.mubr.f32.mxu0 %v518
      %967 = vmatmul.mubr.f32.gmra.mrb[0].mxu0 %v517
      %v968 = vpop.f32.mrb[0].mxu0
      %v969 = vadd.f32 %v824, %v968
      %v970 = vpop.f32.mrb[0].mxu0
      %971 = vmatprep.mubr.f32.mxu0 %v526
      %972 = vmatmul.mubr.f32.gmra.mrb[0].mxu0 %v525
      %v973 = vpop.f32.mrb[0].mxu0
      %v974 = vadd.f32 %v829, %v973
      %v975 = vpop.f32.mrb[0].mxu0
      %976 = vmatprep.mubr.f32.mxu0 %v534
      %977 = vmatmul.mubr.f32.gmra.mrb[0].mxu0 %v533
      %v978 = vpop.f32.mrb[0].mxu0
      %v979 = vadd.f32 %v834, %v978
      %v980 = vpop.f32.mrb[0].mxu0
      %981 = vmatprep.mubr.f32.mxu0 %v542
      %982 = vmatmul.mubr.f32.gmra.mrb[0].mxu0 %v541
      %v983 = vpop.f32.mrb[0].mxu0
      %v984 = vadd.f32 %v839, %v983
      %v985 = vpop.f32.mrb[0].mxu0
      %986 = vmatprep.mubr.f32.mxu0 %v550
      %987 = vmatmul.mubr.f32.gmra.mrb[0].mxu0 %v549
      %v988 = vpop.f32.mrb[0].mxu0
      %v989 = vadd.f32 %v844, %v988
      %v990 = vpop.f32.mrb[0].mxu0
      %991 = vmatprep.mubr.f32.mxu0 %v558
      %992 = vmatmul.mubr.f32.gmra.mrb[0].mxu0 %v557
      %v993 = vpop.f32.mrb[0].mxu0
      %v994 = vadd.f32 %v849, %v993
      %v995 = vpop.f32.mrb[0].mxu0
      %996 = vdwg.mxu0
      %997 = vmatprep.subr.mxu0 0.0
      %998 = vmatpush1.msra.mxu0 %v643
      %999 = vmatprep.subr.mxu0 0.0
      %1000 = vmatpush1.msra.mxu0 %v644
      %1001 = vmatprep.subr.mxu0 0.0
      %1002 = vmatpush1.msra.mxu0 %v645
      %1003 = vmatprep.subr.mxu0 0.0
      %1004 = vmatpush1.msra.mxu0 %v646
      %1005 = vmatprep.subr.mxu0 0.0
      %1006 = vmatpush1.msra.mxu0 %v647
      %1007 = vmatprep.subr.mxu0 0.0
      %1008 = vmatpush1.msra.mxu0 %v648
      %1009 = vmatprep.subr.mxu0 0.0
      %1010 = vmatpush1.msra.mxu0 %v649
      %1011 = vmatprep.subr.mxu0 0.0
      %1012 = vmatpush1.msra.mxu0 %v650
      %1013 = vmatprep.subr.mxu0 0.0
      %1014 = vmatpush1.msra.mxu0 %v651
      %1015 = vmatprep.subr.mxu0 0.0
      %1016 = vmatpush1.msra.mxu0 %v652
      %1017 = vmatprep.subr.mxu0 0.0
      %1018 = vmatpush1.msra.mxu0 %v653
      %1019 = vmatprep.subr.mxu0 0.0
      %1020 = vmatpush1.msra.mxu0 %v654
      %1021 = vmatprep.subr.mxu0 0.0
      %1022 = vmatpush1.msra.mxu0 %v655
      %1023 = vmatprep.subr.mxu0 0.0
      %1024 = vmatpush1.msra.mxu0 %v656
      %1025 = vmatprep.subr.mxu0 0.0
      %1026 = vmatpush1.msra.mxu0 %v657
      %1027 = vmatprep.subr.mxu0 0.0
      %1028 = vmatpush1.msra.mxu0 %v658
      %1029 = vmatprep.subr.mxu0 0.0
      %1030 = vmatpush1.msra.mxu0 %v659
      %1031 = vmatprep.subr.mxu0 0.0
      %1032 = vmatpush1.msra.mxu0 %v660
      %1033 = vmatprep.subr.mxu0 0.0
      %1034 = vmatpush1.msra.mxu0 %v661
      %1035 = vmatprep.subr.mxu0 0.0
      %1036 = vmatpush1.msra.mxu0 %v662
      %1037 = vmatprep.subr.mxu0 0.0
      %1038 = vmatpush1.msra.mxu0 %v663
      %1039 = vmatprep.subr.mxu0 0.0
      %1040 = vmatpush1.msra.mxu0 %v664
      %1041 = vmatprep.subr.mxu0 0.0
      %1042 = vmatpush1.msra.mxu0 %v665
      %1043 = vmatprep.subr.mxu0 0.0
      %1044 = vmatpush1.msra.mxu0 %v666
      %1045 = vmatprep.subr.mxu0 0.0
      %1046 = vmatpush1.msra.mxu0 %v667
      %1047 = vmatprep.subr.mxu0 0.0
      %1048 = vmatpush1.msra.mxu0 %v668
      %1049 = vmatprep.subr.mxu0 0.0
      %1050 = vmatpush1.msra.mxu0 %v669
      %1051 = vmatprep.subr.mxu0 0.0
      %1052 = vmatpush1.msra.mxu0 %v670
      %1053 = vmatprep.subr.mxu0 0.0
      %1054 = vmatpush1.msra.mxu0 %v671
      %1055 = vmatprep.subr.mxu0 0.0
      %1056 = vmatpush1.msra.mxu0 %v672
      %1057 = vmatprep.subr.mxu0 0.0
      %1058 = vmatpush1.msra.mxu0 %v673
      %1059 = vmatprep.subr.mxu0 0.0
      %1060 = vmatpush1.msra.mxu0 %v674
      %1061 = vmatprep.mubr.f32.mxu0 %v440
      %1062 = vmatmul.mubr.f32.gmra.mrb[0].mxu0 %v439
      %v1063 = vpop.f32.mrb[0].mxu0
      %v1064 = vadd.f32 %v919, %v1063
      %v1065 = vpop.f32.mrb[0].mxu0
      %1066 = vmatprep.mubr.f32.mxu0 %v448
      %1067 = vmatmul.mubr.f32.gmra.mrb[0].mxu0 %v447
      %v1068 = vpop.f32.mrb[0].mxu0
      %v1069 = vadd.f32 %v924, %v1068
      %v1070 = vpop.f32.mrb[0].mxu0
      %1071 = vmatprep.mubr.f32.mxu0 %v456
      %1072 = vmatmul.mubr.f32.gmra.mrb[0].mxu0 %v455
      %v1073 = vpop.f32.mrb[0].mxu0
      %v1074 = vadd.f32 %v929, %v1073
      %v1075 = vpop.f32.mrb[0].mxu0
      %1076 = vmatprep.mubr.f32.mxu0 %v464
      %1077 = vmatmul.mubr.f32.gmra.mrb[0].mxu0 %v463
      %v1078 = vpop.f32.mrb[0].mxu0
      %v1079 = vadd.f32 %v934, %v1078
      %v1080 = vpop.f32.mrb[0].mxu0
      %1081 = vmatprep.mubr.f32.mxu0 %v472
      %1082 = vmatmul.mubr.f32.gmra.mrb[0].mxu0 %v471
      %v1083 = vpop.f32.mrb[0].mxu0
      %v1084 = vadd.f32 %v939, %v1083
      %v1085 = vpop.f32.mrb[0].mxu0
      %1086 = vmatprep.mubr.f32.mxu0 %v480
      %1087 = vmatmul.mubr.f32.gmra.mrb[0].mxu0 %v479
      %v1088 = vpop.f32.mrb[0].mxu0
      %v1089 = vadd.f32 %v944, %v1088
      %v1090 = vpop.f32.mrb[0].mxu0
      %1091 = vmatprep.mubr.f32.mxu0 %v488
      %1092 = vmatmul.mubr.f32.gmra.mrb[0].mxu0 %v487
      %v1093 = vpop.f32.mrb[0].mxu0
      %v1094 = vadd.f32 %v949, %v1093
      %v1095 = vpop.f32.mrb[0].mxu0
      %1096 = vmatprep.mubr.f32.mxu0 %v496
      %1097 = vmatmul.mubr.f32.gmra.mrb[0].mxu0 %v495
      %v1098 = vpop.f32.mrb[0].mxu0
      %v1099 = vadd.f32 %v954, %v1098
      %v1100 = vpop.f32.mrb[0].mxu0
      %1101 = vmatprep.mubr.f32.mxu0 %v504
      %1102 = vmatmul.mubr.f32.gmra.mrb[0].mxu0 %v503
      %v1103 = vpop.f32.mrb[0].mxu0
      %v1104 = vadd.f32 %v959, %v1103
      %v1105 = vpop.f32.mrb[0].mxu0
      %1106 = vmatprep.mubr.f32.mxu0 %v512
      %1107 = vmatmul.mubr.f32.gmra.mrb[0].mxu0 %v511
      %v1108 = vpop.f32.mrb[0].mxu0
      %v1109 = vadd.f32 %v964, %v1108
      %v1110 = vpop.f32.mrb[0].mxu0
      %1111 = vmatprep.mubr.f32.mxu0 %v520
      %1112 = vmatmul.mubr.f32.gmra.mrb[0].mxu0 %v519
      %v1113 = vpop.f32.mrb[0].mxu0
      %v1114 = vadd.f32 %v969, %v1113
      %v1115 = vpop.f32.mrb[0].mxu0
      %1116 = vmatprep.mubr.f32.mxu0 %v528
      %1117 = vmatmul.mubr.f32.gmra.mrb[0].mxu0 %v527
      %v1118 = vpop.f32.mrb[0].mxu0
      %v1119 = vadd.f32 %v974, %v1118
      %v1120 = vpop.f32.mrb[0].mxu0
      %1121 = vmatprep.mubr.f32.mxu0 %v536
      %1122 = vmatmul.mubr.f32.gmra.mrb[0].mxu0 %v535
      %v1123 = vpop.f32.mrb[0].mxu0
      %v1124 = vadd.f32 %v979, %v1123
      %v1125 = vpop.f32.mrb[0].mxu0
      %1126 = vmatprep.mubr.f32.mxu0 %v544
      %1127 = vmatmul.mubr.f32.gmra.mrb[0].mxu0 %v543
      %v1128 = vpop.f32.mrb[0].mxu0
      %v1129 = vadd.f32 %v984, %v1128
      %v1130 = vpop.f32.mrb[0].mxu0
      %1131 = vmatprep.mubr.f32.mxu0 %v552
      %1132 = vmatmul.mubr.f32.gmra.mrb[0].mxu0 %v551
      %v1133 = vpop.f32.mrb[0].mxu0
      %v1134 = vadd.f32 %v989, %v1133
      %v1135 = vpop.f32.mrb[0].mxu0
      %1136 = vmatprep.mubr.f32.mxu0 %v560
      %1137 = vmatmul.mubr.f32.gmra.mrb[0].mxu0 %v559
      %v1138 = vpop.f32.mrb[0].mxu0
      %v1139 = vadd.f32 %v994, %v1138
      %v1140 = vpop.f32.mrb[0].mxu0
      %1141 = vdwg.mxu0
      %1142 = vmatprep.subr.mxu0 0.0
      %1143 = vmatpush1.msra.mxu0 %v675
      %1144 = vmatprep.subr.mxu0 0.0
      %1145 = vmatpush1.msra.mxu0 %v676
      %1146 = vmatprep.subr.mxu0 0.0
      %1147 = vmatpush1.msra.mxu0 %v677
      %1148 = vmatprep.subr.mxu0 0.0
      %1149 = vmatpush1.msra.mxu0 %v678
      %1150 = vmatprep.subr.mxu0 0.0
      %1151 = vmatpush1.msra.mxu0 %v679
      %1152 = vmatprep.subr.mxu0 0.0
      %1153 = vmatpush1.msra.mxu0 %v680
      %1154 = vmatprep.subr.mxu0 0.0
      %1155 = vmatpush1.msra.mxu0 %v681
      %1156 = vmatprep.subr.mxu0 0.0
      %1157 = vmatpush1.msra.mxu0 %v682
      %1158 = vmatprep.subr.mxu0 0.0
      %1159 = vmatpush1.msra.mxu0 %v683
      %1160 = vmatprep.subr.mxu0 0.0
      %1161 = vmatpush1.msra.mxu0 %v684
      %1162 = vmatprep.subr.mxu0 0.0
      %1163 = vmatpush1.msra.mxu0 %v685
      %1164 = vmatprep.subr.mxu0 0.0
      %1165 = vmatpush1.msra.mxu0 %v686
      %1166 = vmatprep.subr.mxu0 0.0
      %1167 = vmatpush1.msra.mxu0 %v687
      %1168 = vmatprep.subr.mxu0 0.0
      %1169 = vmatpush1.msra.mxu0 %v688
      %1170 = vmatprep.subr.mxu0 0.0
      %1171 = vmatpush1.msra.mxu0 %v689
      %1172 = vmatprep.subr.mxu0 0.0
      %1173 = vmatpush1.msra.mxu0 %v690
      %1174 = vmatprep.subr.mxu0 0.0
      %1175 = vmatpush1.msra.mxu0 %v691
      %1176 = vmatprep.subr.mxu0 0.0
      %1177 = vmatpush1.msra.mxu0 %v692
      %1178 = vmatprep.subr.mxu0 0.0
      %1179 = vmatpush1.msra.mxu0 %v693
      %1180 = vmatprep.subr.mxu0 0.0
      %1181 = vmatpush1.msra.mxu0 %v694
      %1182 = vmatprep.subr.mxu0 0.0
      %1183 = vmatpush1.msra.mxu0 %v695
      %1184 = vmatprep.subr.mxu0 0.0
      %1185 = vmatpush1.msra.mxu0 %v696
      %1186 = vmatprep.subr.mxu0 0.0
      %1187 = vmatpush1.msra.mxu0 %v697
      %1188 = vmatprep.subr.mxu0 0.0
      %1189 = vmatpush1.msra.mxu0 %v698
      %1190 = vmatprep.subr.mxu0 0.0
      %1191 = vmatpush1.msra.mxu0 %v699
      %1192 = vmatprep.subr.mxu0 0.0
      %1193 = vmatpush1.msra.mxu0 %v700
      %1194 = vmatprep.subr.mxu0 0.0
      %1195 = vmatpush1.msra.mxu0 %v701
      %1196 = vmatprep.subr.mxu0 0.0
      %1197 = vmatpush1.msra.mxu0 %v702
      %1198 = vmatprep.subr.mxu0 0.0
      %1199 = vmatpush1.msra.mxu0 %v703
      %1200 = vmatprep.subr.mxu0 0.0
      %1201 = vmatpush1.msra.mxu0 %v704
      %1202 = vmatprep.subr.mxu0 0.0
      %1203 = vmatpush1.msra.mxu0 %v705
      %1204 = vmatprep.subr.mxu0 0.0
      %1205 = vmatpush1.msra.mxu0 %v706
      %1206 = vmatprep.mubr.f32.mxu0 %v442
      %1207 = vmatmul.mubr.f32.gmra.mrb[0].mxu0 %v441
      %v1208 = vpop.f32.mrb[0].mxu0
      %v1209 = vadd.f32 %v1064, %v1208
      %v1210 = vpop.f32.mrb[0].mxu0
      %1211 = vmatprep.mubr.f32.mxu0 %v450
      %1212 = vmatmul.mubr.f32.gmra.mrb[0].mxu0 %v449
      %v1213 = vpop.f32.mrb[0].mxu0
      %v1214 = vadd.f32 %v1069, %v1213
      %v1215 = vpop.f32.mrb[0].mxu0
      %1216 = vmatprep.mubr.f32.mxu0 %v458
      %1217 = vmatmul.mubr.f32.gmra.mrb[0].mxu0 %v457
      %v1218 = vpop.f32.mrb[0].mxu0
      %v1219 = vadd.f32 %v1074, %v1218
      %v1220 = vpop.f32.mrb[0].mxu0
      %1221 = vmatprep.mubr.f32.mxu0 %v466
      %1222 = vmatmul.mubr.f32.gmra.mrb[0].mxu0 %v465
      %v1223 = vpop.f32.mrb[0].mxu0
      %v1224 = vadd.f32 %v1079, %v1223
      %v1225 = vpop.f32.mrb[0].mxu0
      %1226 = vmatprep.mubr.f32.mxu0 %v474
      %1227 = vmatmul.mubr.f32.gmra.mrb[0].mxu0 %v473
      %v1228 = vpop.f32.mrb[0].mxu0
      %v1229 = vadd.f32 %v1084, %v1228
      %v1230 = vpop.f32.mrb[0].mxu0
      %1231 = vmatprep.mubr.f32.mxu0 %v482
      %1232 = vmatmul.mubr.f32.gmra.mrb[0].mxu0 %v481
      %v1233 = vpop.f32.mrb[0].mxu0
      %v1234 = vadd.f32 %v1089, %v1233
      %v1235 = vpop.f32.mrb[0].mxu0
      %1236 = vmatprep.mubr.f32.mxu0 %v490
      %1237 = vmatmul.mubr.f32.gmra.mrb[0].mxu0 %v489
      %v1238 = vpop.f32.mrb[0].mxu0
      %v1239 = vadd.f32 %v1094, %v1238
      %v1240 = vpop.f32.mrb[0].mxu0
      %1241 = vmatprep.mubr.f32.mxu0 %v498
      %1242 = vmatmul.mubr.f32.gmra.mrb[0].mxu0 %v497
      %v1243 = vpop.f32.mrb[0].mxu0
      %v1244 = vadd.f32 %v1099, %v1243
      %v1245 = vpop.f32.mrb[0].mxu0
      %1246 = vmatprep.mubr.f32.mxu0 %v506
      %1247 = vmatmul.mubr.f32.gmra.mrb[0].mxu0 %v505
      %v1248 = vpop.f32.mrb[0].mxu0
      %v1249 = vadd.f32 %v1104, %v1248
      %v1250 = vpop.f32.mrb[0].mxu0
      %1251 = vmatprep.mubr.f32.mxu0 %v514
      %1252 = vmatmul.mubr.f32.gmra.mrb[0].mxu0 %v513
      %v1253 = vpop.f32.mrb[0].mxu0
      %v1254 = vadd.f32 %v1109, %v1253
      %v1255 = vpop.f32.mrb[0].mxu0
      %1256 = vmatprep.mubr.f32.mxu0 %v522
      %1257 = vmatmul.mubr.f32.gmra.mrb[0].mxu0 %v521
      %v1258 = vpop.f32.mrb[0].mxu0
      %v1259 = vadd.f32 %v1114, %v1258
      %v1260 = vpop.f32.mrb[0].mxu0
      %1261 = vmatprep.mubr.f32.mxu0 %v530
      %1262 = vmatmul.mubr.f32.gmra.mrb[0].mxu0 %v529
      %v1263 = vpop.f32.mrb[0].mxu0
      %v1264 = vadd.f32 %v1119, %v1263
      %v1265 = vpop.f32.mrb[0].mxu0
      %1266 = vmatprep.mubr.f32.mxu0 %v538
      %1267 = vmatmul.mubr.f32.gmra.mrb[0].mxu0 %v537
      %v1268 = vpop.f32.mrb[0].mxu0
      %v1269 = vadd.f32 %v1124, %v1268
      %v1270 = vpop.f32.mrb[0].mxu0
      %1271 = vmatprep.mubr.f32.mxu0 %v546
      %1272 = vmatmul.mubr.f32.gmra.mrb[0].mxu0 %v545
      %v1273 = vpop.f32.mrb[0].mxu0
      %v1274 = vadd.f32 %v1129, %v1273
      %v1275 = vpop.f32.mrb[0].mxu0
      %1276 = vmatprep.mubr.f32.mxu0 %v554
      %1277 = vmatmul.mubr.f32.gmra.mrb[0].mxu0 %v553
      %v1278 = vpop.f32.mrb[0].mxu0
      %v1279 = vadd.f32 %v1134, %v1278
      %v1280 = vpop.f32.mrb[0].mxu0
      %1281 = vmatprep.mubr.f32.mxu0 %v562
      %1282 = vmatmul.mubr.f32.gmra.mrb[0].mxu0 %v561
      %v1283 = vpop.f32.mrb[0].mxu0
      %v1284 = vadd.f32 %v1139, %v1283
      %v1285 = vpop.f32.mrb[0].mxu0
      %1286 = vdwg.mxu0
      %v1287 = vadd.f32 %v563, %v1209
      %v1288 = vadd.f32 %v564, %v1214
      %v1289 = vadd.f32 %v565, %v1219
      %v1290 = vadd.f32 %v566, %v1224
      %v1291 = vadd.f32 %v567, %v1229
      %v1292 = vadd.f32 %v568, %v1234
      %v1293 = vadd.f32 %v569, %v1239
      %v1294 = vadd.f32 %v570, %v1244
      %v1295 = vadd.f32 %v571, %v1249
      %v1296 = vadd.f32 %v572, %v1254
      %v1297 = vadd.f32 %v573, %v1259
      %v1298 = vadd.f32 %v574, %v1264
      %v1299 = vadd.f32 %v575, %v1269
      %v1300 = vadd.f32 %v576, %v1274
      %v1301 = vadd.f32 %v577, %v1279
      %v1302 = vadd.f32 %v578, %v1284
      %1303 = vst [vmem:[#allocation2] sm:$0xff] %v1287
      %1304 = vst [vmem:[#allocation2 + $0x8] sm:$0xff] %v1288
      %1305 = vst [vmem:[#allocation2 + $0x10] sm:$0xff] %v1289
      %1306 = vst [vmem:[#allocation2 + $0x18] sm:$0xff] %v1290
      %1307 = vst [vmem:[#allocation2 + $0x20] sm:$0xff] %v1291
      %1308 = vst [vmem:[#allocation2 + $0x28] sm:$0xff] %v1292
      %1309 = vst [vmem:[#allocation2 + $0x30] sm:$0xff] %v1293
      %1310 = vst [vmem:[#allocation2 + $0x38] sm:$0xff] %v1294
      %1311 = vst [vmem:[#allocation2 + $0x40] sm:$0xff] %v1295
      %1312 = vst [vmem:[#allocation2 + $0x48] sm:$0xff] %v1296
      %1313 = vst [vmem:[#allocation2 + $0x50] sm:$0xff] %v1297
      %1314 = vst [vmem:[#allocation2 + $0x58] sm:$0xff] %v1298
      %1315 = vst [vmem:[#allocation2 + $0x60] sm:$0xff] %v1299
      %1316 = vst [vmem:[#allocation2 + $0x68] sm:$0xff] %v1300
      %1317 = vst [vmem:[#allocation2 + $0x70] sm:$0xff] %v1301
      %1318 = vst [vmem:[#allocation2 + $0x78] sm:$0xff] %v1302
      // Predicated region
      $region37: #{unet_innermost_forward.3} parent=31 // pred_check
        %p1319 = pneg %p415
      $region38: #{unet_innermost_forward.3} parent=31 // pred_check_branch
        %1321 = sbr.rel (%p1319) target = $region40
      $region39: #{unet_innermost_forward.3} parent=31 // pred_region
        %v1322 = vld [vmem:[#allocation2] sm:$0xff]
        %v1323 = vld [vmem:[#allocation2 + $0x8] sm:$0xff]
        %v1324 = vld [vmem:[#allocation2 + $0x10] sm:$0xff]
        %v1325 = vld [vmem:[#allocation2 + $0x18] sm:$0xff]
        %v1326 = vld [vmem:[#allocation2 + $0x20] sm:$0xff]
        %v1327 = vld [vmem:[#allocation2 + $0x28] sm:$0xff]
        %v1328 = vld [vmem:[#allocation2 + $0x30] sm:$0xff]
        %v1329 = vld [vmem:[#allocation2 + $0x38] sm:$0xff]
        %v1330 = vld [vmem:[#allocation2 + $0x40] sm:$0xff]
        %v1331 = vld [vmem:[#allocation2 + $0x48] sm:$0xff]
        %v1332 = vld [vmem:[#allocation2 + $0x50] sm:$0xff]
        %v1333 = vld [vmem:[#allocation2 + $0x58] sm:$0xff]
        %v1334 = vld [vmem:[#allocation2 + $0x60] sm:$0xff]
        %v1335 = vld [vmem:[#allocation2 + $0x68] sm:$0xff]
        %v1336 = vld [vmem:[#allocation2 + $0x70] sm:$0xff]
        %v1337 = vld [vmem:[#allocation2 + $0x78] sm:$0xff]
        %v1338 = vld [vmem:[%s383] sm:$0x1]
        %v1340 = vlaneseq
        %v1341 = vshrl.u32 %v1340, 7
        %v1342 = vsub.s32 0, %v1341
        %v1343 = vrot.slane %v1338, %v1342
        %v1345 = vadd.f32 %v1322, %v1343
        %v1346 = vadd.f32 %v1323, %v1343
        %v1347 = vadd.f32 %v1324, %v1343
        %v1348 = vadd.f32 %v1325, %v1343
        %v1349 = vadd.f32 %v1326, %v1343
        %v1350 = vadd.f32 %v1327, %v1343
        %v1351 = vadd.f32 %v1328, %v1343
        %v1352 = vadd.f32 %v1329, %v1343
        %v1353 = vadd.f32 %v1330, %v1343
        %v1354 = vadd.f32 %v1331, %v1343
        %v1355 = vadd.f32 %v1332, %v1343
        %v1356 = vadd.f32 %v1333, %v1343
        %v1357 = vadd.f32 %v1334, %v1343
        %v1358 = vadd.f32 %v1335, %v1343
        %v1359 = vadd.f32 %v1336, %v1343
        %v1360 = vadd.f32 %v1337, %v1343
        %1361 = vst [vmem:[%s395] sm:$0xff] %v1345
        %1362 = vst [vmem:[%s395 + $0x8] sm:$0xff] %v1346
        %1363 = vst [vmem:[%s395 + $0x10] sm:$0xff] %v1347
        %1364 = vst [vmem:[%s395 + $0x18] sm:$0xff] %v1348
        %1365 = vst [vmem:[%s395 + $0x20] sm:$0xff] %v1349
        %1366 = vst [vmem:[%s395 + $0x28] sm:$0xff] %v1350
        %1367 = vst [vmem:[%s395 + $0x30] sm:$0xff] %v1351
        %1368 = vst [vmem:[%s395 + $0x38] sm:$0xff] %v1352
        %1369 = vst [vmem:[%s395 + $0x40] sm:$0xff] %v1353
        %1370 = vst [vmem:[%s395 + $0x48] sm:$0xff] %v1354
        %1371 = vst [vmem:[%s395 + $0x50] sm:$0xff] %v1355
        %1372 = vst [vmem:[%s395 + $0x58] sm:$0xff] %v1356
        %1373 = vst [vmem:[%s395 + $0x60] sm:$0xff] %v1357
        %1374 = vst [vmem:[%s395 + $0x68] sm:$0xff] %v1358
        %1375 = vst [vmem:[%s395 + $0x70] sm:$0xff] %v1359
        %1376 = vst [vmem:[%s395 + $0x78] sm:$0xff] %v1360
        %v1377 = vlaneseq
        %v1378 = vshrl.u32 %v1377, 7
        %v1379 = vadd.s32 %v1378, 8
        %v1380 = vadd.s32 %v1378, 16
        %v1381 = vadd.s32 %v1378, 24
        %v1382 = vadd.s32 %v1378, 32
        %v1383 = vadd.s32 %v1378, 40
        %v1384 = vadd.s32 %v1378, 48
        %v1385 = vadd.s32 %v1378, 56
        %v1386 = vadd.s32 %v1378, 64
        %v1387 = vadd.s32 %v1378, 72
        %v1388 = vadd.s32 %v1378, 80
        %v1389 = vadd.s32 %v1378, 88
        %v1390 = vadd.s32 %v1378, 96
        %v1391 = vadd.s32 %v1378, 104
        %v1392 = vadd.s32 %v1378, 112
        %v1393 = vadd.s32 %v1378, 120
        %s1394 = smul.u32 %s23, 128
        %v1395 = vstv %s1394
        %v1396 = vadd.s32 %v1378, %v1395
        %v1397 = vadd.s32 %v1379, %v1395
        %v1398 = vadd.s32 %v1380, %v1395
        %v1399 = vadd.s32 %v1381, %v1395
        %v1400 = vadd.s32 %v1382, %v1395
        %v1401 = vadd.s32 %v1383, %v1395
        %v1402 = vadd.s32 %v1384, %v1395
        %v1403 = vadd.s32 %v1385, %v1395
        %v1404 = vadd.s32 %v1386, %v1395
        %v1405 = vadd.s32 %v1387, %v1395
        %v1406 = vadd.s32 %v1388, %v1395
        %v1407 = vadd.s32 %v1389, %v1395
        %v1408 = vadd.s32 %v1390, %v1395
        %v1409 = vadd.s32 %v1391, %v1395
        %v1410 = vadd.s32 %v1392, %v1395
        %v1411 = vadd.s32 %v1393, %v1395
        %vm1412 = vcmp.lt.s32.totalorder %v1396, 128
        %vm1413 = vcmp.lt.s32.totalorder %v1397, 128
        %vm1414 = vcmp.lt.s32.totalorder %v1398, 128
        %vm1415 = vcmp.lt.s32.totalorder %v1399, 128
        %vm1416 = vcmp.lt.s32.totalorder %v1400, 128
        %vm1417 = vcmp.lt.s32.totalorder %v1401, 128
        %vm1418 = vcmp.lt.s32.totalorder %v1402, 128
        %vm1419 = vcmp.lt.s32.totalorder %v1403, 128
        %vm1420 = vcmp.lt.s32.totalorder %v1404, 128
        %vm1421 = vcmp.lt.s32.totalorder %v1405, 128
        %vm1422 = vcmp.lt.s32.totalorder %v1406, 128
        %vm1423 = vcmp.lt.s32.totalorder %v1407, 128
        %vm1424 = vcmp.lt.s32.totalorder %v1408, 128
        %vm1425 = vcmp.lt.s32.totalorder %v1409, 128
        %vm1426 = vcmp.lt.s32.totalorder %v1410, 128
        %vm1427 = vcmp.lt.s32.totalorder %v1411, 128
        %v1428 = vsel %vm1412, 1, 0
        %v1429 = vsel %vm1413, 1, 0
        %v1430 = vsel %vm1414, 1, 0
        %v1431 = vsel %vm1415, 1, 0
        %v1432 = vsel %vm1416, 1, 0
        %v1433 = vsel %vm1417, 1, 0
        %v1434 = vsel %vm1418, 1, 0
        %v1435 = vsel %vm1419, 1, 0
        %v1436 = vsel %vm1420, 1, 0
        %v1437 = vsel %vm1421, 1, 0
        %v1438 = vsel %vm1422, 1, 0
        %v1439 = vsel %vm1423, 1, 0
        %v1440 = vsel %vm1424, 1, 0
        %v1441 = vsel %vm1425, 1, 0
        %v1442 = vsel %vm1426, 1, 0
        %v1443 = vsel %vm1427, 1, 0
        %vm1444 = vcmp.eq.s32.totalorder %v1428, 1
        %vm1445 = vcmp.eq.s32.totalorder %v1429, 1
        %vm1446 = vcmp.eq.s32.totalorder %v1430, 1
        %vm1447 = vcmp.eq.s32.totalorder %v1431, 1
        %vm1448 = vcmp.eq.s32.totalorder %v1432, 1
        %vm1449 = vcmp.eq.s32.totalorder %v1433, 1
        %vm1450 = vcmp.eq.s32.totalorder %v1434, 1
        %vm1451 = vcmp.eq.s32.totalorder %v1435, 1
        %vm1452 = vcmp.eq.s32.totalorder %v1436, 1
        %vm1453 = vcmp.eq.s32.totalorder %v1437, 1
        %vm1454 = vcmp.eq.s32.totalorder %v1438, 1
        %vm1455 = vcmp.eq.s32.totalorder %v1439, 1
        %vm1456 = vcmp.eq.s32.totalorder %v1440, 1
        %vm1457 = vcmp.eq.s32.totalorder %v1441, 1
        %vm1458 = vcmp.eq.s32.totalorder %v1442, 1
        %vm1459 = vcmp.eq.s32.totalorder %v1443, 1
        %v1460 = vsel %vm1444, %v1345, 0.0
        %v1461 = vsel %vm1445, %v1346, 0.0
        %v1462 = vsel %vm1446, %v1347, 0.0
        %v1463 = vsel %vm1447, %v1348, 0.0
        %v1464 = vsel %vm1448, %v1349, 0.0
        %v1465 = vsel %vm1449, %v1350, 0.0
        %v1466 = vsel %vm1450, %v1351, 0.0
        %v1467 = vsel %vm1451, %v1352, 0.0
        %v1468 = vsel %vm1452, %v1353, 0.0
        %v1469 = vsel %vm1453, %v1354, 0.0
        %v1470 = vsel %vm1454, %v1355, 0.0
        %v1471 = vsel %vm1455, %v1356, 0.0
        %v1472 = vsel %vm1456, %v1357, 0.0
        %v1473 = vsel %vm1457, %v1358, 0.0
        %v1474 = vsel %vm1458, %v1359, 0.0
        %v1475 = vsel %vm1459, %v1360, 0.0
        %v1476 = vadd.f32 %v1460, %v1461
        %v1477 = vadd.f32 %v1476, %v1462
        %v1478 = vadd.f32 %v1477, %v1463
        %v1479 = vadd.f32 %v1478, %v1464
        %v1480 = vadd.f32 %v1479, %v1465
        %v1481 = vadd.f32 %v1480, %v1466
        %v1482 = vadd.f32 %v1481, %v1467
        %v1483 = vadd.f32 %v1482, %v1468
        %v1484 = vadd.f32 %v1483, %v1469
        %v1485 = vadd.f32 %v1484, %v1470
        %v1486 = vadd.f32 %v1485, %v1471
        %v1487 = vadd.f32 %v1486, %v1472
        %v1488 = vadd.f32 %v1487, %v1473
        %v1489 = vadd.f32 %v1488, %v1474
        %v1490 = vadd.f32 %v1489, %v1475
        %v1491 = vrot.slane %v1490, 4
        %v1492 = vadd.f32 %v1490, %v1491
        %v1493 = vrot.slane %v1492, 2
        %v1494 = vadd.f32 %v1492, %v1493
        %v1495 = vrot.slane %v1494, 1
        %v1496 = vadd.f32 %v1494, %v1495
        %1497 = vst [vmem:[%s405] sm:$0x1] %v1496
        %v1498 = vmul.f32 %v1460, %v1460
        %v1499 = vmul.f32 %v1461, %v1461
        %v1500 = vmul.f32 %v1462, %v1462
        %v1501 = vmul.f32 %v1463, %v1463
        %v1502 = vmul.f32 %v1464, %v1464
        %v1503 = vmul.f32 %v1465, %v1465
        %v1504 = vmul.f32 %v1466, %v1466
        %v1505 = vmul.f32 %v1467, %v1467
        %v1506 = vmul.f32 %v1468, %v1468
        %v1507 = vmul.f32 %v1469, %v1469
        %v1508 = vmul.f32 %v1470, %v1470
        %v1509 = vmul.f32 %v1471, %v1471
        %v1510 = vmul.f32 %v1472, %v1472
        %v1511 = vmul.f32 %v1473, %v1473
        %v1512 = vmul.f32 %v1474, %v1474
        %v1513 = vmul.f32 %v1475, %v1475
        %v1514 = vadd.f32 %v1498, %v1499
        %v1515 = vadd.f32 %v1514, %v1500
        %v1516 = vadd.f32 %v1515, %v1501
        %v1517 = vadd.f32 %v1516, %v1502
        %v1518 = vadd.f32 %v1517, %v1503
        %v1519 = vadd.f32 %v1518, %v1504
        %v1520 = vadd.f32 %v1519, %v1505
        %v1521 = vadd.f32 %v1520, %v1506
        %v1522 = vadd.f32 %v1521, %v1507
        %v1523 = vadd.f32 %v1522, %v1508
        %v1524 = vadd.f32 %v1523, %v1509
        %v1525 = vadd.f32 %v1524, %v1510
        %v1526 = vadd.f32 %v1525, %v1511
        %v1527 = vadd.f32 %v1526, %v1512
        %v1528 = vadd.f32 %v1527, %v1513
        %v1529 = vrot.slane %v1528, 4
        %v1530 = vadd.f32 %v1528, %v1529
        %v1531 = vrot.slane %v1530, 2
        %v1532 = vadd.f32 %v1530, %v1531
        %v1533 = vrot.slane %v1532, 1
        %v1534 = vadd.f32 %v1532, %v1533
        %1535 = vst [vmem:[%s414] sm:$0x1] %v1534
      $region40: #{unet_innermost_forward.3} parent=31 // pred_fallthru
        _
      %s1536 = smul.u32 16, %s23
      %p1537 = scmp.lt.s32.totalorder %s25, 7
      %s1538 = scalar_select %p1537, %s25, 7
      %p1539 = scmp.lt.s32.totalorder %s1536, 15
      %s1540 = scalar_select %p1539, %s1536, 15
      %p1541 = scmp.lt.s32.totalorder %s24, 0
      %s1542 = scalar_select %p1541, %s24, 0
      %s1543 = sadd.s32 %s1542, %s1540
      %s1544 = smul.addr %s1538, 16
      %s1545 = sadd.s32 %s1543, %s1544
      %s1546 = smul.addr %s1545, 8
      %s1547 = scalar_lea.vmem %s3, %s1546
      %p1548 = scmp.lt.s32.totalorder %s25, 7
      %s1549 = scalar_select %p1548, %s25, 7
      %p1550 = scmp.lt.s32.totalorder %s23, 0
      %s1551 = scalar_select %p1550, %s23, 0
      %p1552 = scmp.lt.s32.totalorder %s24, 0
      %s1553 = scalar_select %p1552, %s24, 0
      %s1554 = sadd.s32 %s1553, %s1551
      %s1555 = sadd.s32 %s1554, %s1549
      %s1556 = scalar_lea.vmem %s4, %s1555
      %p1557 = scmp.lt.s32.totalorder %s25, 7
      %s1558 = scalar_select %p1557, %s25, 7
      %p1559 = scmp.lt.s32.totalorder %s23, 0
      %s1560 = scalar_select %p1559, %s23, 0
      %p1561 = scmp.lt.s32.totalorder %s24, 0
      %s1562 = scalar_select %p1561, %s24, 0
      %s1563 = sadd.s32 %s1562, %s1560
      %s1564 = sadd.s32 %s1563, %s1558
      %s1565 = scalar_lea.vmem %s5, %s1564
      // Predicated region
      $region41: #{unet_innermost_forward.3} parent=31 // pred_check
        %p1566 = pneg %p151
      $region42: #{unet_innermost_forward.3} parent=31 // pred_check_branch
        %1568 = sbr.rel (%p1566) target = $region44
      $region43: #{unet_innermost_forward.3} parent=31 // pred_region
        %s1569 = smul.u32 16, %s23
      $region44: #{unet_innermost_forward.3} parent=31 // pred_fallthru
        _
      // Predicated region
      $region45: #{unet_innermost_forward.3} parent=31 // pred_check
        %p1570 = pneg %p181
      $region46: #{unet_innermost_forward.3} parent=31 // pred_check_branch
        %1572 = sbr.rel (%p1570) target = $region48
      $region47: #{unet_innermost_forward.3} parent=31 // pred_region
        _
      $region48: #{unet_innermost_forward.3} parent=31 // pred_fallthru
        _
      // Predicated region
      $region49: #{unet_innermost_forward.3} parent=31 // pred_check
        %p1573 = pneg %p211
      $region50: #{unet_innermost_forward.3} parent=31 // pred_check_branch
        %1575 = sbr.rel (%p1573) target = $region52
      $region51: #{unet_innermost_forward.3} parent=31 // pred_region
        _
      $region52: #{unet_innermost_forward.3} parent=31 // pred_fallthru
        _
    $region32: #{unet_innermost_forward.3} parent=5 // pred_fallthru
      _
    %p1576 = scmp.le.s32.totalorder 2, %s12
    // Predicated region
    $region53: #{unet_innermost_forward.3} parent=5 // pred_check
      %p1577 = pneg %p1576
    $region54: #{unet_innermost_forward.3} parent=5 // pred_check_branch
      %1579 = sbr.rel (%p1577) target = $region56
    $region55: #{unet_innermost_forward.3} parent=5 // pred_region
      %s1580 = ssub.s32 %s12, 2
      // Predicated region
      $region57: #{unet_innermost_forward.3} parent=55 // pred_check
        %p1581 = pneg %p157
      $region58: #{unet_innermost_forward.3} parent=55 // pred_check_branch
        %1583 = sbr.rel (%p1581) target = $region60
      $region59: #{unet_innermost_forward.3} parent=55 // pred_region
        %s1584 = smul.u32 16, %s27
        %p1585 = scmp.lt.s32.totalorder %s29, 7
        %s1586 = scalar_select %p1585, %s29, 7
        %p1587 = scmp.lt.s32.totalorder %s1584, 15
        %s1588 = scalar_select %p1587, %s1584, 15
        %p1589 = scmp.lt.s32.totalorder %s28, 0
        %s1590 = scalar_select %p1589, %s28, 0
        %s1591 = sadd.s32 %s1590, %s1588
        %s1592 = smul.addr %s1586, 16
        %s1593 = sadd.s32 %s1591, %s1592
        %s1594 = smul.addr %s1593, 8
        %s1595 = scalar_lea.vmem %s3, %s1594
      $region60: #{unet_innermost_forward.3} parent=55 // pred_fallthru
        _
      // Predicated region
      $region61: #{unet_innermost_forward.3} parent=55 // pred_check
        %p1596 = pneg %p187
      $region62: #{unet_innermost_forward.3} parent=55 // pred_check_branch
        %1598 = sbr.rel (%p1596) target = $region64
      $region63: #{unet_innermost_forward.3} parent=55 // pred_region
        %p1599 = scmp.lt.s32.totalorder %s29, 7
        %s1600 = scalar_select %p1599, %s29, 7
        %p1601 = scmp.lt.s32.totalorder %s27, 0
        %s1602 = scalar_select %p1601, %s27, 0
        %p1603 = scmp.lt.s32.totalorder %s28, 0
        %s1604 = scalar_select %p1603, %s28, 0
        %s1605 = sadd.s32 %s1604, %s1602
        %s1606 = sadd.s32 %s1605, %s1600
        %s1607 = scalar_lea.vmem %s4, %s1606
      $region64: #{unet_innermost_forward.3} parent=55 // pred_fallthru
        _
      // Predicated region
      $region65: #{unet_innermost_forward.3} parent=55 // pred_check
        %p1608 = pneg %p217
      $region66: #{unet_innermost_forward.3} parent=55 // pred_check_branch
        %1610 = sbr.rel (%p1608) target = $region68
      $region67: #{unet_innermost_forward.3} parent=55 // pred_region
        %p1611 = scmp.lt.s32.totalorder %s29, 7
        %s1612 = scalar_select %p1611, %s29, 7
        %p1613 = scmp.lt.s32.totalorder %s27, 0
        %s1614 = scalar_select %p1613, %s27, 0
        %p1615 = scmp.lt.s32.totalorder %s28, 0
        %s1616 = scalar_select %p1615, %s28, 0
        %s1617 = sadd.s32 %s1616, %s1614
        %s1618 = sadd.s32 %s1617, %s1612
        %s1619 = scalar_lea.vmem %s5, %s1618
      $region68: #{unet_innermost_forward.3} parent=55 // pred_fallthru
        _
    $region56: #{unet_innermost_forward.3} parent=5 // pred_fallthru
      _
  $region6: #{unet_innermost_forward.3} parent=0 // loop_footer
    %s16 = sadd.s32 1, %s12
  $region7: #{unet_innermost_forward.3} parent=0 // loop_footer_branch
    %11 = sbr.rel target = $region3
  $region8: #{unet_innermost_forward.3} parent=0 // loop_exit
    _

</llo_original>
